<compile_context>
chip_gen: v6e
topology: v6e:2x2x1
jax: 0.10.0
libtpu: 0.0.40
codegen_flags: <defaults>
</compile_context>

<pallas_src>
import math

import jax
import jax.numpy as jnp
from jax.experimental import pallas as pl
from jax.experimental.pallas import tpu as pltpu

EPS = 1e-5
MXU_DTYPE = jnp.bfloat16   # MXU operand dtype (BN math stays f32)


# ---------------- fused Pallas kernel ----------------

def _make_fused_dnn_kernel(dims, n_tiles, tb, batch):
    """dims = hidden_units tuple, e.g. (32, 64, 32, 1); last entry must be 1.

    Ref order after x_ref:
      per BN layer j: Wj (Dout,Din) bf16, bj (Dout,1), gammaj (Dout,1), betaj (Dout,1)
      head:           w  (Dlast,1) f32,  b (1,1) f32
      output:         o  (1, B) f32
      scratch:        sum0 (D1,1), sumsq0 (D1,1), act_j (dims[j+1], B) for each BN layer
    """
    n_lin = len(dims) - 1
    n_bn = n_lin - 1                      # every linear but the width-1 head
    inv_b = 1.0 / float(batch)

    def _tile(t):
        off = t * tb
        if tb % 128 == 0:
            off = pl.multiple_of(off, 128)
        return pl.ds(off, tb)

    def kernel(x_ref, *refs):
        layer_p = [refs[4 * j: 4 * j + 4] for j in range(n_bn)]
        wh_ref, bh_ref = refs[4 * n_bn], refs[4 * n_bn + 1]
        o_ref = refs[4 * n_bn + 2]
        sum0_ref, sumsq0_ref = refs[4 * n_bn + 3], refs[4 * n_bn + 4]
        act_refs = refs[4 * n_bn + 5:]

        i = pl.program_id(0)

        @pl.when(i == 0)
        def _():
            sum0_ref[...] = jnp.zeros_like(sum0_ref)
            sumsq0_ref[...] = jnp.zeros_like(sumsq0_ref)

        # ---- streamed per-tile work: layer-0 Linear+ReLU + BN-stat accumulation ----
        w0_ref, b0_ref, _, _ = layer_p[0]
        x_t = x_ref[...].astype(MXU_DTYPE)                            # (D0, TB)
        a0 = jnp.dot(w0_ref[...], x_t, preferred_element_type=jnp.float32)
        a0 = jnp.maximum(a0 + b0_ref[...], 0.0)                       # (D1, TB) f32
        act_refs[0][:, _tile(i)] = a0
        sum0_ref[...] += jnp.sum(a0, axis=1, keepdims=True)
        sumsq0_ref[...] += jnp.sum(a0 * a0, axis=1, keepdims=True)

        # ---- last tile: finalize BN stats layer-by-layer, run the rest in VMEM ----
        @pl.when(i == n_tiles - 1)
        def _():
            def bn_affine(s, ss, g_ref, beta_ref):
                # One-pass moments (biased var, eps=1e-5) folded into scale/shift.
                # Must stay f32: E[a^2]-E[a]^2 cancels badly in lower precision.
                mean = s * inv_b
                var = ss * inv_b - mean * mean
                scale = g_ref[...] * jax.lax.rsqrt(var + EPS)
                shift = beta_ref[...] - mean * scale
                return scale, shift

            scale, shift = bn_affine(sum0_ref[...], sumsq0_ref[...],
                                     layer_p[0][2], layer_p[0][3])

            # Middle layers: normalize previous acts, Linear+ReLU, new BN stats.
            for j in range(1, n_bn):
                wj_ref, bj_ref, gj_ref, betaj_ref = layer_p[j]
                dj = dims[j + 1]

                def body(t, carry):
                    s, ss = carry
                    prev = act_refs[j - 1][:, _tile(t)]
                    h = (prev * scale + shift).astype(MXU_DTYPE)
                    a = jnp.dot(wj_ref[...], h, preferred_element_type=jnp.float32)
                    a = jnp.maximum(a + bj_ref[...], 0.0)
                    act_refs[j][:, _tile(t)] = a
                    return (s + jnp.sum(a, axis=1, keepdims=True),
                            ss + jnp.sum(a * a, axis=1, keepdims=True))

                zero = jnp.zeros((dj, 1), jnp.float32)
                s, ss = jax.lax.fori_loop(0, n_tiles, body, (zero, zero),
                                          unroll=n_tiles <= 8)
                scale, shift = bn_affine(s, ss, gj_ref, betaj_ref)

            # Width-1 head folded into the last BN affine:
            #   out = sum_d w_d*(scale_d*a_d + shift_d) + b
            #       = sum_d (w_d*scale_d)*a_d + (sum_d w_d*shift_d + b)
            gscale = wh_ref[...] * scale                              # (D_last, 1)
            const = jnp.sum(wh_ref[...] * shift, axis=0, keepdims=True) + bh_ref[...]

            def head(t, carry):
                a = act_refs[n_bn - 1][:, _tile(t)]
                o_ref[:, _tile(t)] = (jnp.sum(a * gscale, axis=0, keepdims=True)
                                      + const)
                return carry

            jax.lax.fori_loop(0, n_tiles, head, 0, unroll=n_tiles <= 8)

    return kernel


# ---------------- wrapper ----------------

def dnn_forward(x, params, *, block_batch=128):
    """x: (batch, in_features) f32 (PyTorch layout). Returns (batch, 1)."""
    assert params[-1][0] == "lin" and params[-1][1].shape[0] == 1, \
        "last layer must be the width-1 head"   # TODO(synk): generic last width
    n_lin = len(params)
    n_bn = n_lin - 1
    assert n_bn >= 1, "need at least one hidden [Linear, ReLU, BN] block"

    dims = (params[0][1].shape[1],) + tuple(p[1].shape[0] for p in params)
    B, f0 = x.shape
    assert f0 == dims[0]

    # Batch tile on the lane axis.  128 keeps the demo multi-tile; for large B
    # raise block_batch (512-2048) to amortize the ~0.35us per-step overhead,
    # and consider pipeline_mode=pl.Buffered(3) on the x spec for v5e.
    tb = block_batch if (block_batch % 128 == 0 and B % block_batch == 0) else B
    n_tiles = B // tb

    x_fm = x.astype(jnp.float32).T                      # (D0, B): batch on lanes

    flat = []
    for (_, w, b, g, be) in params[:-1]:
        flat += [w.astype(MXU_DTYPE),                   # (Dout, Din) bf16 for the MXU
                 b.reshape(-1, 1).astype(jnp.float32),
                 g.reshape(-1, 1).astype(jnp.float32),
                 be.reshape(-1, 1).astype(jnp.float32)]
    _, wh, bh = params[-1]
    flat += [wh.reshape(-1, 1).astype(jnp.float32),     # head weight stays f32 (VPU reduce)
             bh.reshape(1, 1).astype(jnp.float32)]

    in_specs = [pl.BlockSpec((dims[0], tb), lambda i: (0, i))]
    in_specs += [pl.BlockSpec(a.shape, lambda i: (0, 0)) for a in flat]
    out_spec = pl.BlockSpec((1, B), lambda i: (0, 0))   # lane-dense, grid-resident

    scratch = [pltpu.VMEM((dims[1], 1), jnp.float32),   # layer-0 batch sum
               pltpu.VMEM((dims[1], 1), jnp.float32)]   # layer-0 batch sum of squares
    scratch += [pltpu.VMEM((dims[j + 1], B), jnp.float32) for j in range(n_bn)]

    # Rough VMEM budget; only pin the limit when above the default scoped budget
    # (v7x: 64 MiB physical per TC, v5e/v6e: 128 MiB).
    est = (sum(dims[j + 1] * B * 4 for j in range(n_bn))          # activation scratch
           + 2 * dims[0] * tb * 4                                 # double-buffered x tile
           + sum(int(a.size) * a.dtype.itemsize for a in flat)    # resident params
           + 4 * B * 4)                                           # (1, B) output + slack
    vmem_limit = None
    if est > (24 << 20):
        vmem_limit = int(min(est * 3 // 2 + (4 << 20), 96 << 20))

    cost = pl.CostEstimate(
        flops=int(2 * B * sum(dims[i] * dims[i + 1] for i in range(n_lin))),
        transcendentals=int(sum(dims[1:-1])),                     # one rsqrt per BN feature
        bytes_accessed=int(x.size * 4
                           + sum(int(a.size) * a.dtype.itemsize for a in flat)
                           + B * 4),
    )

    kernel = _make_fused_dnn_kernel(dims, n_tiles, tb, B)
    out = pl.pallas_call(
        kernel,
        out_shape=jax.ShapeDtypeStruct((1, B), jnp.float32),
        grid_spec=pltpu.PrefetchScalarGridSpec(
            num_scalar_prefetch=0,
            grid=(n_tiles,),
            in_specs=in_specs,
            out_specs=out_spec,
            scratch_shapes=scratch),
        compiler_params=pltpu.CompilerParams(
            # "arbitrary": BN statistics accumulate across batch tiles, so this
            # axis is sequential (megacore sharding would break full-batch BN).
            dimension_semantics=("arbitrary",),
            vmem_limit_bytes=vmem_limit),
        cost_estimate=cost,
    )(x_fm, *flat)
    return out.reshape(B, 1).astype(x.dtype)


# ---------------- parameter init (deterministic, PyTorch-like) ----------------

def init_params(hidden_units, key):
    assert len(hidden_units) >= 3 and hidden_units[-1] == 1, \
        "expects DeepFM-style hidden_units, e.g. [in, h1, ..., 1]"
    assert all(h != 1 for h in hidden_units[1:-1])
    params = []
    n_lin = len(hidden_units) - 1
    for i in range(n_lin):
        din, dout = hidden_units[i], hidden_units[i + 1]
        key, kw, kb = jax.random.split(key, 3)
        bound = 1.0 / math.sqrt(din)
        w = jax.random.uniform(kw, (dout, din), jnp.float32, -bound, bound)  # torch (out,in)
        b = jax.random.uniform(kb, (dout,), jnp.float32, -bound, bound)
        if i < n_lin - 1:       # followed by ReLU + BatchNorm1d (width != 1)
            params.append(("lin_relu_bn", w, b,
                           jnp.ones((dout,), jnp.float32),     # BN weight (gamma)
                           jnp.zeros((dout,), jnp.float32)))   # BN bias (beta)
        else:
            params.append(("lin", w, b))
    return params


# ---------------- reference (plain JAX) for sanity ----------------

def dnn_reference(x, params, *, emulate_bf16=False):
    """Exact nn.Module semantics (training-mode BN). emulate_bf16 applies the
    kernel's bf16 rounding of MXU operands on the hidden-layer matmuls only
    (the width-1 head is computed in f32 in the kernel)."""
    h = x.astype(jnp.float32)
    for p in params:
        if p[0] == "lin_relu_bn":
            _, w, b, gamma, beta = p
            if emulate_bf16:
                pre = jnp.dot(h.astype(jnp.bfloat16), w.T.astype(jnp.bfloat16),
                              preferred_element_type=jnp.float32)
            else:
                pre = h @ w.T
            a = jnp.maximum(pre + b[None, :], 0.0)
            mean = jnp.mean(a, axis=0, keepdims=True)
            var = jnp.mean((a - mean) ** 2, axis=0, keepdims=True)
            h = gamma[None, :] * (a - mean) / jnp.sqrt(var + EPS) + beta[None, :]
        else:
            _, w, b = p
            h = h @ w.T + b[None, :]
    return h


if __name__ == "__main__":
    hidden_units = [32, 64, 32, 1]          # DNN([32, 64, 32, 1]) from DeepFM
    key = jax.random.PRNGKey(0)
    key, kp = jax.random.split(key)
    params = init_params(hidden_units, kp)

    for batch in (256, 128):                # 2-tile pipelined grid and single-tile paths
        key, kx = jax.random.split(key)
        x = jax.random.normal(kx, (batch, hidden_units[0]), jnp.float32)

        out = jax.block_until_ready(dnn_forward(x, params, block_batch=128))
        assert out.shape == (batch, 1)

        ref_same_prec = dnn_reference(x, params, emulate_bf16=True)
        ref_f32 = dnn_reference(x, params, emulate_bf16=False)
        assert jnp.allclose(out, ref_same_prec, atol=1e-2, rtol=1e-2), \
            "mismatch vs bf16-matmul reference"
        assert jnp.allclose(out, ref_f32, atol=5e-2, rtol=5e-2), \
            "mismatch vs full-f32 reference"

    print("KERNEL_OK")
</pallas_src>

<mosaic_0001>
module attributes {stable_mosaic.version = 11 : i64} {
  func.func @kernel(%arg0: i32, %arg1: memref<32x128xf32, #tpu.memory_space<vmem>>, %arg2: memref<64x32xbf16, #tpu.memory_space<vmem>>, %arg3: memref<64x1xf32, #tpu.memory_space<vmem>>, %arg4: memref<64x1xf32, #tpu.memory_space<vmem>>, %arg5: memref<64x1xf32, #tpu.memory_space<vmem>>, %arg6: memref<32x64xbf16, #tpu.memory_space<vmem>>, %arg7: memref<32x1xf32, #tpu.memory_space<vmem>>, %arg8: memref<32x1xf32, #tpu.memory_space<vmem>>, %arg9: memref<32x1xf32, #tpu.memory_space<vmem>>, %arg10: memref<32x1xf32, #tpu.memory_space<vmem>>, %arg11: memref<1x1xf32, #tpu.memory_space<vmem>>, %arg12: memref<1x256xf32, #tpu.memory_space<vmem>>, %arg13: memref<64x1xf32, #tpu.memory_space<vmem>>, %arg14: memref<64x1xf32, #tpu.memory_space<vmem>>, %arg15: memref<64x256xf32, #tpu.memory_space<vmem>>, %arg16: memref<32x256xf32, #tpu.memory_space<vmem>>) attributes {dimension_semantics = [#tpu.dimension_semantics<arbitrary>], iteration_bounds = array<i64: 2>, scalar_prefetch = 0 : i64, scratch_operands = 4 : i64, tpu.core_type = #tpu.core_type<tc>, window_params = [{transform_indices = @transform_0, window_bounds = array<i64: 32, 128>}, {pipeline_mode = #tpu.pipeline_mode<synchronous>, transform_indices = @transform_1, window_bounds = array<i64: 64, 32>}, {pipeline_mode = #tpu.pipeline_mode<synchronous>, transform_indices = @transform_2, window_bounds = array<i64: 64, 1>}, {pipeline_mode = #tpu.pipeline_mode<synchronous>, transform_indices = @transform_3, window_bounds = array<i64: 64, 1>}, {pipeline_mode = #tpu.pipeline_mode<synchronous>, transform_indices = @transform_4, window_bounds = array<i64: 64, 1>}, {pipeline_mode = #tpu.pipeline_mode<synchronous>, transform_indices = @transform_5, window_bounds = array<i64: 32, 64>}, {pipeline_mode = #tpu.pipeline_mode<synchronous>, transform_indices = @transform_6, window_bounds = array<i64: 32, 1>}, {pipeline_mode = #tpu.pipeline_mode<synchronous>, transform_indices = @transform_7, window_bounds = array<i64: 32, 1>}, {pipeline_mode = #tpu.pipeline_mode<synchronous>, transform_indices = @transform_8, window_bounds = array<i64: 32, 1>}, {pipeline_mode = #tpu.pipeline_mode<synchronous>, transform_indices = @transform_9, window_bounds = array<i64: 32, 1>}, {pipeline_mode = #tpu.pipeline_mode<synchronous>, transform_indices = @transform_10, window_bounds = array<i64: 1, 1>}, {pipeline_mode = #tpu.pipeline_mode<synchronous>, transform_indices = @transform_11, window_bounds = array<i64: 1, 256>}]} {
    %c0_i32 = arith.constant 0 : i32
    %0 = arith.cmpi eq, %arg0, %c0_i32 : i32
    %1 = arith.extui %0 : i1 to i32
    %c0_i32_0 = arith.constant 0 : i32
    %2 = arith.cmpi ne, %1, %c0_i32_0 : i32
    scf.if %2 {
      %cst_19 = arith.constant 0.000000e+00 : f32
      %30 = vector.broadcast %cst_19 : f32 to vector<64x1xf32>
      %c0_20 = arith.constant 0 : index
      %c0_21 = arith.constant 0 : index
      %31 = vector.load %arg13[%c0_20, %c0_21] : memref<64x1xf32, #tpu.memory_space<vmem>>, vector<64x1xf32>
      tpu.vector_store %arg13[%c0_20, %c0_21], %30 {strides = array<i32>} : memref<64x1xf32, #tpu.memory_space<vmem>>, vector<64x1xf32>,
      %cst_22 = arith.constant 0.000000e+00 : f32
      %32 = vector.broadcast %cst_22 : f32 to vector<64x1xf32>
      %c0_23 = arith.constant 0 : index
      %c0_24 = arith.constant 0 : index
      %33 = vector.load %arg14[%c0_23, %c0_24] : memref<64x1xf32, #tpu.memory_space<vmem>>, vector<64x1xf32>
      tpu.vector_store %arg14[%c0_23, %c0_24], %32 {strides = array<i32>} : memref<64x1xf32, #tpu.memory_space<vmem>>, vector<64x1xf32>,
    } else {
    }
    %c0 = arith.constant 0 : index
    %c0_1 = arith.constant 0 : index
    %3 = vector.load %arg1[%c0, %c0_1] : memref<32x128xf32, #tpu.memory_space<vmem>>, vector<32x128xf32>
    %4 = arith.truncf %3 : vector<32x128xf32> to vector<32x128xbf16>
    %c0_2 = arith.constant 0 : index
    %c0_3 = arith.constant 0 : index
    %5 = vector.load %arg2[%c0_2, %c0_3] : memref<64x32xbf16, #tpu.memory_space<vmem>>, vector<64x32xbf16>
    %cst = arith.constant dense<0.000000e+00> : vector<64x128xf32>
    %6 = tpu.matmul %5, %4, %cst {dimension_numbers = #tpu.dot_dimension_numbers<[1], [0], [0], [1], [0, 0, 1, 1], [], []>} : vector<64x32xbf16>, vector<32x128xbf16>, vector<64x128xf32> -> vector<64x128xf32>
    %c0_4 = arith.constant 0 : index
    %c0_5 = arith.constant 0 : index
    %7 = vector.load %arg3[%c0_4, %c0_5] : memref<64x1xf32, #tpu.memory_space<vmem>>, vector<64x1xf32>
    %8 = vector.broadcast %7 : vector<64x1xf32> to vector<64x128xf32>
    %9 = arith.addf %6, %8 : vector<64x128xf32>
    %cst_6 = arith.constant 0.000000e+00 : f32
    %10 = vector.broadcast %cst_6 : f32 to vector<64x128xf32>
    %11 = arith.maximumf %9, %10 : vector<64x128xf32>
    %c128_i32 = arith.constant 128 : i32
    %12 = arith.muli %arg0, %c128_i32 : i32
    %13 = tpu.assume_multiple %12, 128 : i32
    %c0_7 = arith.constant 0 : index
    %14 = arith.index_cast %13 : i32 to index
    %15 = vector.load %arg15[%c0_7, %14] : memref<64x256xf32, #tpu.memory_space<vmem>>, vector<64x128xf32>
    tpu.vector_store %arg15[%c0_7, %14], %11 {strides = array<i32>} : memref<64x256xf32, #tpu.memory_space<vmem>>, vector<64x128xf32>,
    %c0_8 = arith.constant 0 : index
    %c0_9 = arith.constant 0 : index
    %16 = vector.load %arg13[%c0_8, %c0_9] : memref<64x1xf32, #tpu.memory_space<vmem>>, vector<64x1xf32>
    %cst_10 = arith.constant dense<0.000000e+00> : vector<64xf32>
    %17 = vector.multi_reduction <add>, %11, %cst_10 [1] : vector<64x128xf32> to vector<64xf32>
    %18 = vector.shape_cast %17 : vector<64xf32> to vector<64x1xf32>
    %19 = arith.addf %16, %18 : vector<64x1xf32>
    %c0_11 = arith.constant 0 : index
    %c0_12 = arith.constant 0 : index
    %20 = vector.load %arg13[%c0_11, %c0_12] : memref<64x1xf32, #tpu.memory_space<vmem>>, vector<64x1xf32>
    tpu.vector_store %arg13[%c0_11, %c0_12], %19 {strides = array<i32>} : memref<64x1xf32, #tpu.memory_space<vmem>>, vector<64x1xf32>,
    %c0_13 = arith.constant 0 : index
    %c0_14 = arith.constant 0 : index
    %21 = vector.load %arg14[%c0_13, %c0_14] : memref<64x1xf32, #tpu.memory_space<vmem>>, vector<64x1xf32>
    %22 = arith.mulf %11, %11 : vector<64x128xf32>
    %cst_15 = arith.constant dense<0.000000e+00> : vector<64xf32>
    %23 = vector.multi_reduction <add>, %22, %cst_15 [1] : vector<64x128xf32> to vector<64xf32>
    %24 = vector.shape_cast %23 : vector<64xf32> to vector<64x1xf32>
    %25 = arith.addf %21, %24 : vector<64x1xf32>
    %c0_16 = arith.constant 0 : index
    %c0_17 = arith.constant 0 : index
    %26 = vector.load %arg14[%c0_16, %c0_17] : memref<64x1xf32, #tpu.memory_space<vmem>>, vector<64x1xf32>
    tpu.vector_store %arg14[%c0_16, %c0_17], %25 {strides = array<i32>} : memref<64x1xf32, #tpu.memory_space<vmem>>, vector<64x1xf32>,
    %c1_i32 = arith.constant 1 : i32
    %27 = arith.cmpi eq, %arg0, %c1_i32 : i32
    %28 = arith.extui %27 : i1 to i32
    %c0_i32_18 = arith.constant 0 : i32
    %29 = arith.cmpi ne, %28, %c0_i32_18 : i32
    scf.if %29 {
      %c0_19 = arith.constant 0 : index
      %c0_20 = arith.constant 0 : index
      %30 = vector.load %arg13[%c0_19, %c0_20] : memref<64x1xf32, #tpu.memory_space<vmem>>, vector<64x1xf32>
      %c0_21 = arith.constant 0 : index
      %c0_22 = arith.constant 0 : index
      %31 = vector.load %arg14[%c0_21, %c0_22] : memref<64x1xf32, #tpu.memory_space<vmem>>, vector<64x1xf32>
      %cst_23 = arith.constant 3.906250e-03 : f32
      %32 = vector.broadcast %cst_23 : f32 to vector<64x1xf32>
      %33 = arith.mulf %30, %32 : vector<64x1xf32>
      %cst_24 = arith.constant 3.906250e-03 : f32
      %34 = vector.broadcast %cst_24 : f32 to vector<64x1xf32>
      %35 = arith.mulf %31, %34 : vector<64x1xf32>
      %36 = arith.mulf %33, %33 : vector<64x1xf32>
      %37 = arith.subf %35, %36 : vector<64x1xf32>
      %c0_25 = arith.constant 0 : index
      %c0_26 = arith.constant 0 : index
      %38 = vector.load %arg4[%c0_25, %c0_26] : memref<64x1xf32, #tpu.memory_space<vmem>>, vector<64x1xf32>
      %cst_27 = arith.constant 9.99999974E-6 : f32
      %39 = vector.broadcast %cst_27 : f32 to vector<64x1xf32>
      %40 = arith.addf %37, %39 : vector<64x1xf32>
      %41 = math.rsqrt %40 : vector<64x1xf32>
      %42 = arith.mulf %38, %41 : vector<64x1xf32>
      %c0_28 = arith.constant 0 : index
      %c0_29 = arith.constant 0 : index
      %43 = vector.load %arg5[%c0_28, %c0_29] : memref<64x1xf32, #tpu.memory_space<vmem>>, vector<64x1xf32>
      %44 = arith.mulf %33, %42 : vector<64x1xf32>
      %45 = arith.subf %43, %44 : vector<64x1xf32>
      %cst_30 = arith.constant 0.000000e+00 : f32
      %46 = vector.broadcast %cst_30 : f32 to vector<32x1xf32>
      %c0_i32_31 = arith.constant 0 : i32
      %c128_i32_32 = arith.constant 128 : i32
      %47 = arith.muli %c0_i32_31, %c128_i32_32 : i32
      %48 = tpu.assume_multiple %47, 128 : i32
      %c0_33 = arith.constant 0 : index
      %49 = arith.index_cast %48 : i32 to index
      %50 = vector.load %arg15[%c0_33, %49] : memref<64x256xf32, #tpu.memory_space<vmem>>, vector<64x128xf32>
      %51 = vector.broadcast %42 : vector<64x1xf32> to vector<64x128xf32>
      %52 = arith.mulf %50, %51 : vector<64x128xf32>
      %53 = vector.broadcast %45 : vector<64x1xf32> to vector<64x128xf32>
      %54 = arith.addf %52, %53 : vector<64x128xf32>
      %55 = arith.truncf %54 : vector<64x128xf32> to vector<64x128xbf16>
      %c0_34 = arith.constant 0 : index
      %c0_35 = arith.constant 0 : index
      %56 = vector.load %arg6[%c0_34, %c0_35] : memref<32x64xbf16, #tpu.memory_space<vmem>>, vector<32x64xbf16>
      %cst_36 = arith.constant dense<0.000000e+00> : vector<32x128xf32>
      %57 = tpu.matmul %56, %55, %cst_36 {dimension_numbers = #tpu.dot_dimension_numbers<[1], [0], [0], [1], [0, 0, 1, 1], [], []>} : vector<32x64xbf16>, vector<64x128xbf16>, vector<32x128xf32> -> vector<32x128xf32>
      %c0_37 = arith.constant 0 : index
      %c0_38 = arith.constant 0 : index
      %58 = vector.load %arg7[%c0_37, %c0_38] : memref<32x1xf32, #tpu.memory_space<vmem>>, vector<32x1xf32>
      %59 = vector.broadcast %58 : vector<32x1xf32> to vector<32x128xf32>
      %60 = arith.addf %57, %59 : vector<32x128xf32>
      %cst_39 = arith.constant 0.000000e+00 : f32
      %61 = vector.broadcast %cst_39 : f32 to vector<32x128xf32>
      %62 = arith.maximumf %60, %61 : vector<32x128xf32>
      %c128_i32_40 = arith.constant 128 : i32
      %63 = arith.muli %c0_i32_31, %c128_i32_40 : i32
      %64 = tpu.assume_multiple %63, 128 : i32
      %c0_41 = arith.constant 0 : index
      %65 = arith.index_cast %64 : i32 to index
      %66 = vector.load %arg16[%c0_41, %65] : memref<32x256xf32, #tpu.memory_space<vmem>>, vector<32x128xf32>
      tpu.vector_store %arg16[%c0_41, %65], %62 {strides = array<i32>} : memref<32x256xf32, #tpu.memory_space<vmem>>, vector<32x128xf32>,
      %cst_42 = arith.constant dense<0.000000e+00> : vector<32xf32>
      %67 = vector.multi_reduction <add>, %62, %cst_42 [1] : vector<32x128xf32> to vector<32xf32>
      %68 = vector.shape_cast %67 : vector<32xf32> to vector<32x1xf32>
      %69 = arith.addf %46, %68 : vector<32x1xf32>
      %70 = arith.mulf %62, %62 : vector<32x128xf32>
      %cst_43 = arith.constant dense<0.000000e+00> : vector<32xf32>
      %71 = vector.multi_reduction <add>, %70, %cst_43 [1] : vector<32x128xf32> to vector<32xf32>
      %72 = vector.shape_cast %71 : vector<32xf32> to vector<32x1xf32>
      %73 = arith.addf %46, %72 : vector<32x1xf32>
      %c1_i32_44 = arith.constant 1 : i32
      %c128_i32_45 = arith.constant 128 : i32
      %74 = arith.muli %c1_i32_44, %c128_i32_45 : i32
      %75 = tpu.assume_multiple %74, 128 : i32
      %c0_46 = arith.constant 0 : index
      %76 = arith.index_cast %75 : i32 to index
      %77 = vector.load %arg15[%c0_46, %76] : memref<64x256xf32, #tpu.memory_space<vmem>>, vector<64x128xf32>
      %78 = vector.broadcast %42 : vector<64x1xf32> to vector<64x128xf32>
      %79 = arith.mulf %77, %78 : vector<64x128xf32>
      %80 = vector.broadcast %45 : vector<64x1xf32> to vector<64x128xf32>
      %81 = arith.addf %79, %80 : vector<64x128xf32>
      %82 = arith.truncf %81 : vector<64x128xf32> to vector<64x128xbf16>
      %c0_47 = arith.constant 0 : index
      %c0_48 = arith.constant 0 : index
      %83 = vector.load %arg6[%c0_47, %c0_48] : memref<32x64xbf16, #tpu.memory_space<vmem>>, vector<32x64xbf16>
      %cst_49 = arith.constant dense<0.000000e+00> : vector<32x128xf32>
      %84 = tpu.matmul %83, %82, %cst_49 {dimension_numbers = #tpu.dot_dimension_numbers<[1], [0], [0], [1], [0, 0, 1, 1], [], []>} : vector<32x64xbf16>, vector<64x128xbf16>, vector<32x128xf32> -> vector<32x128xf32>
      %c0_50 = arith.constant 0 : index
      %c0_51 = arith.constant 0 : index
      %85 = vector.load %arg7[%c0_50, %c0_51] : memref<32x1xf32, #tpu.memory_space<vmem>>, vector<32x1xf32>
      %86 = vector.broadcast %85 : vector<32x1xf32> to vector<32x128xf32>
      %87 = arith.addf %84, %86 : vector<32x128xf32>
      %cst_52 = arith.constant 0.000000e+00 : f32
      %88 = vector.broadcast %cst_52 : f32 to vector<32x128xf32>
      %89 = arith.maximumf %87, %88 : vector<32x128xf32>
      %c128_i32_53 = arith.constant 128 : i32
      %90 = arith.muli %c1_i32_44, %c128_i32_53 : i32
      %91 = tpu.assume_multiple %90, 128 : i32
      %c0_54 = arith.constant 0 : index
      %92 = arith.index_cast %91 : i32 to index
      %93 = vector.load %arg16[%c0_54, %92] : memref<32x256xf32, #tpu.memory_space<vmem>>, vector<32x128xf32>
      tpu.vector_store %arg16[%c0_54, %92], %89 {strides = array<i32>} : memref<32x256xf32, #tpu.memory_space<vmem>>, vector<32x128xf32>,
      %cst_55 = arith.constant dense<0.000000e+00> : vector<32xf32>
      %94 = vector.multi_reduction <add>, %89, %cst_55 [1] : vector<32x128xf32> to vector<32xf32>
      %95 = vector.shape_cast %94 : vector<32xf32> to vector<32x1xf32>
      %96 = arith.addf %69, %95 : vector<32x1xf32>
      %97 = arith.mulf %89, %89 : vector<32x128xf32>
      %cst_56 = arith.constant dense<0.000000e+00> : vector<32xf32>
      %98 = vector.multi_reduction <add>, %97, %cst_56 [1] : vector<32x128xf32> to vector<32xf32>
      %99 = vector.shape_cast %98 : vector<32xf32> to vector<32x1xf32>
      %100 = arith.addf %73, %99 : vector<32x1xf32>
      %c2_i32 = arith.constant 2 : i32
      %cst_57 = arith.constant 3.906250e-03 : f32
      %101 = vector.broadcast %cst_57 : f32 to vector<32x1xf32>
      %102 = arith.mulf %96, %101 : vector<32x1xf32>
      %cst_58 = arith.constant 3.906250e-03 : f32
      %103 = vector.broadcast %cst_58 : f32 to vector<32x1xf32>
      %104 = arith.mulf %100, %103 : vector<32x1xf32>
      %105 = arith.mulf %102, %102 : vector<32x1xf32>
      %106 = arith.subf %104, %105 : vector<32x1xf32>
      %c0_59 = arith.constant 0 : index
      %c0_60 = arith.constant 0 : index
      %107 = vector.load %arg8[%c0_59, %c0_60] : memref<32x1xf32, #tpu.memory_space<vmem>>, vector<32x1xf32>
      %cst_61 = arith.constant 9.99999974E-6 : f32
      %108 = vector.broadcast %cst_61 : f32 to vector<32x1xf32>
      %109 = arith.addf %106, %108 : vector<32x1xf32>
      %110 = math.rsqrt %109 : vector<32x1xf32>
      %111 = arith.mulf %107, %110 : vector<32x1xf32>
      %c0_62 = arith.constant 0 : index
      %c0_63 = arith.constant 0 : index
      %112 = vector.load %arg9[%c0_62, %c0_63] : memref<32x1xf32, #tpu.memory_space<vmem>>, vector<32x1xf32>
      %113 = arith.mulf %102, %111 : vector<32x1xf32>
      %114 = arith.subf %112, %113 : vector<32x1xf32>
      %c0_64 = arith.constant 0 : index
      %c0_65 = arith.constant 0 : index
      %115 = vector.load %arg10[%c0_64, %c0_65] : memref<32x1xf32, #tpu.memory_space<vmem>>, vector<32x1xf32>
      %116 = arith.mulf %115, %111 : vector<32x1xf32>
      %c0_66 = arith.constant 0 : index
      %c0_67 = arith.constant 0 : index
      %117 = vector.load %arg10[%c0_66, %c0_67] : memref<32x1xf32, #tpu.memory_space<vmem>>, vector<32x1xf32>
      %118 = arith.mulf %117, %114 : vector<32x1xf32>
      %cst_68 = arith.constant dense<0.000000e+00> : vector<1xf32>
      %119 = vector.multi_reduction <add>, %118, %cst_68 [0] : vector<32x1xf32> to vector<1xf32>
      %120 = vector.shape_cast %119 : vector<1xf32> to vector<1x1xf32>
      %c0_69 = arith.constant 0 : index
      %c0_70 = arith.constant 0 : index
      %121 = vector.load %arg11[%c0_69, %c0_70] : memref<1x1xf32, #tpu.memory_space<vmem>>, vector<1x1xf32>
      %122 = arith.addf %120, %121 : vector<1x1xf32>
      %c0_i32_71 = arith.constant 0 : i32
      %c128_i32_72 = arith.constant 128 : i32
      %123 = arith.muli %c0_i32_71, %c128_i32_72 : i32
      %124 = tpu.assume_multiple %123, 128 : i32
      %c0_73 = arith.constant 0 : index
      %125 = arith.index_cast %124 : i32 to index
      %126 = vector.load %arg16[%c0_73, %125] : memref<32x256xf32, #tpu.memory_space<vmem>>, vector<32x128xf32>
      %127 = vector.broadcast %116 : vector<32x1xf32> to vector<32x128xf32>
      %128 = arith.mulf %126, %127 : vector<32x128xf32>
      %cst_74 = arith.constant dense<0.000000e+00> : vector<128xf32>
      %129 = vector.multi_reduction <add>, %128, %cst_74 [0] : vector<32x128xf32> to vector<128xf32>
      %130 = vector.shape_cast %129 : vector<128xf32> to vector<1x128xf32>
      %131 = vector.broadcast %122 : vector<1x1xf32> to vector<1x128xf32>
      %132 = arith.addf %130, %131 : vector<1x128xf32>
      %c128_i32_75 = arith.constant 128 : i32
      %133 = arith.muli %c0_i32_71, %c128_i32_75 : i32
      %134 = tpu.assume_multiple %133, 128 : i32
      %c0_76 = arith.constant 0 : index
      %135 = arith.index_cast %134 : i32 to index
      %136 = vector.load %arg12[%c0_76, %135] : memref<1x256xf32, #tpu.memory_space<vmem>>, vector<1x128xf32>
      tpu.vector_store %arg12[%c0_76, %135], %132 {strides = array<i32>} : memref<1x256xf32, #tpu.memory_space<vmem>>, vector<1x128xf32>,
      %c1_i32_77 = arith.constant 1 : i32
      %c128_i32_78 = arith.constant 128 : i32
      %137 = arith.muli %c1_i32_77, %c128_i32_78 : i32
      %138 = tpu.assume_multiple %137, 128 : i32
      %c0_79 = arith.constant 0 : index
      %139 = arith.index_cast %138 : i32 to index
      %140 = vector.load %arg16[%c0_79, %139] : memref<32x256xf32, #tpu.memory_space<vmem>>, vector<32x128xf32>
      %141 = vector.broadcast %116 : vector<32x1xf32> to vector<32x128xf32>
      %142 = arith.mulf %140, %141 : vector<32x128xf32>
      %cst_80 = arith.constant dense<0.000000e+00> : vector<128xf32>
      %143 = vector.multi_reduction <add>, %142, %cst_80 [0] : vector<32x128xf32> to vector<128xf32>
      %144 = vector.shape_cast %143 : vector<128xf32> to vector<1x128xf32>
      %145 = vector.broadcast %122 : vector<1x1xf32> to vector<1x128xf32>
      %146 = arith.addf %144, %145 : vector<1x128xf32>
      %c128_i32_81 = arith.constant 128 : i32
      %147 = arith.muli %c1_i32_77, %c128_i32_81 : i32
      %148 = tpu.assume_multiple %147, 128 : i32
      %c0_82 = arith.constant 0 : index
      %149 = arith.index_cast %148 : i32 to index
      %150 = vector.load %arg12[%c0_82, %149] : memref<1x256xf32, #tpu.memory_space<vmem>>, vector<1x128xf32>
      tpu.vector_store %arg12[%c0_82, %149], %146 {strides = array<i32>} : memref<1x256xf32, #tpu.memory_space<vmem>>, vector<1x128xf32>,
      %c2_i32_83 = arith.constant 2 : i32
    } else {
    }
    return
  }
  func.func @transform_0(%arg0: i32) -> (i32, i32) {
    %c0_i32 = arith.constant 0 : i32
    %c0_i32_0 = arith.constant 0 : i32
    return %c0_i32, %arg0 : i32, i32
  }
  func.func @transform_1(%arg0: i32) -> (i32, i32) {
    %c0_i32 = arith.constant 0 : i32
    %c0_i32_0 = arith.constant 0 : i32
    %c0_i32_1 = arith.constant 0 : i32
    return %c0_i32, %c0_i32_0 : i32, i32
  }
  func.func @transform_2(%arg0: i32) -> (i32, i32) {
    %c0_i32 = arith.constant 0 : i32
    %c0_i32_0 = arith.constant 0 : i32
    %c0_i32_1 = arith.constant 0 : i32
    return %c0_i32, %c0_i32_0 : i32, i32
  }
  func.func @transform_3(%arg0: i32) -> (i32, i32) {
    %c0_i32 = arith.constant 0 : i32
    %c0_i32_0 = arith.constant 0 : i32
    %c0_i32_1 = arith.constant 0 : i32
    return %c0_i32, %c0_i32_0 : i32, i32
  }
  func.func @transform_4(%arg0: i32) -> (i32, i32) {
    %c0_i32 = arith.constant 0 : i32
    %c0_i32_0 = arith.constant 0 : i32
    %c0_i32_1 = arith.constant 0 : i32
    return %c0_i32, %c0_i32_0 : i32, i32
  }
  func.func @transform_5(%arg0: i32) -> (i32, i32) {
    %c0_i32 = arith.constant 0 : i32
    %c0_i32_0 = arith.constant 0 : i32
    %c0_i32_1 = arith.constant 0 : i32
    return %c0_i32, %c0_i32_0 : i32, i32
  }
  func.func @transform_6(%arg0: i32) -> (i32, i32) {
    %c0_i32 = arith.constant 0 : i32
    %c0_i32_0 = arith.constant 0 : i32
    %c0_i32_1 = arith.constant 0 : i32
    return %c0_i32, %c0_i32_0 : i32, i32
  }
  func.func @transform_7(%arg0: i32) -> (i32, i32) {
    %c0_i32 = arith.constant 0 : i32
    %c0_i32_0 = arith.constant 0 : i32
    %c0_i32_1 = arith.constant 0 : i32
    return %c0_i32, %c0_i32_0 : i32, i32
  }
  func.func @transform_8(%arg0: i32) -> (i32, i32) {
    %c0_i32 = arith.constant 0 : i32
    %c0_i32_0 = arith.constant 0 : i32
    %c0_i32_1 = arith.constant 0 : i32
    return %c0_i32, %c0_i32_0 : i32, i32
  }
  func.func @transform_9(%arg0: i32) -> (i32, i32) {
    %c0_i32 = arith.constant 0 : i32
    %c0_i32_0 = arith.constant 0 : i32
    %c0_i32_1 = arith.constant 0 : i32
    return %c0_i32, %c0_i32_0 : i32, i32
  }
  func.func @transform_10(%arg0: i32) -> (i32, i32) {
    %c0_i32 = arith.constant 0 : i32
    %c0_i32_0 = arith.constant 0 : i32
    %c0_i32_1 = arith.constant 0 : i32
    return %c0_i32, %c0_i32_0 : i32, i32
  }
  func.func @transform_11(%arg0: i32) -> (i32, i32) {
    %c0_i32 = arith.constant 0 : i32
    %c0_i32_0 = arith.constant 0 : i32
    %c0_i32_1 = arith.constant 0 : i32
    return %c0_i32, %c0_i32_0 : i32, i32
  }
}

</mosaic_0001>

<llo_original>
// kernel: tpu_custom_call.1
$region0: #{tpu_custom_call.1}
  #allocation0 [shape = 'u32[]', space=smem, size = 0x4, offset = 0x4, fixed_abs, tag = 'smem constant byte address 0x4 - core index']
  #allocation1 [shape = 'u32[144,128]{1,0:T(1,128)}', space=vmem, size = 0x12000, scoped, tag = 'internal scratch']
  #allocation2 [shape = 'f32[64,1]{1,0:T(8,128)}', space=vmem, size = 0x8000, scoped, tag = 'scratch operand']
  #allocation3 [shape = 'f32[64,1]{1,0:T(8,128)}', space=vmem, size = 0x8000, scoped, tag = 'scratch operand']
  #allocation4 [shape = 'f32[64,256]{1,0:T(8,128)}', space=vmem, size = 0x10000, scoped, tag = 'scratch operand']
  #allocation5 [shape = 'f32[32,256]{1,0:T(8,128)}', space=vmem, size = 0x8000, scoped, tag = 'scratch operand']
  #allocation6 [shape = 'f32[1,1]{1,0:T(1,128)S(1)}', space=vmem, size = 0x200, scoped, tag = 'scoped memory for tpu_custom_call.1']
  %s0 = inlined_call_operand.vmem [shape: f32[32,256], index: 0, kind: input, shape index: {}]
  %s1 = inlined_call_operand.vmem [shape: bf16[64,32], index: 1, kind: input, shape index: {}]
  %s2 = inlined_call_operand.vmem [shape: f32[64,1], index: 2, kind: input, shape index: {}]
  %s3 = inlined_call_operand.vmem [shape: f32[64,1], index: 3, kind: input, shape index: {}]
  %s4 = inlined_call_operand.vmem [shape: f32[64,1], index: 4, kind: input, shape index: {}]
  %s5 = inlined_call_operand.vmem [shape: bf16[32,64], index: 5, kind: input, shape index: {}]
  %s6 = inlined_call_operand.vmem [shape: f32[32,1], index: 6, kind: input, shape index: {}]
  %s7 = inlined_call_operand.vmem [shape: f32[32,1], index: 7, kind: input, shape index: {}]
  %s8 = inlined_call_operand.vmem [shape: f32[32,1], index: 8, kind: input, shape index: {}]
  %s9 = inlined_call_operand.vmem [shape: f32[32,1], index: 9, kind: input, shape index: {}]
  %s10 = inlined_call_operand.<no memory space> [shape: f32[1,1], index: 10, kind: input, shape index: {}]
  %s11 = inlined_call_operand.hbm [shape: f32[1,256], index: 11, kind: output, shape index: {}]
  %s12 = sld [smem:[#allocation0]]
  $region123: #{tpu_custom_call.1} parent=0
    _
  %s14 = ssub.s32 1, %s12
  %s15 = scalar_select 0, %s14, %s12
  %v16 = vstv %s10
  %17 = vst [vmem:[#allocation6] sm:$0x1] %v16
  $region1: #{tpu_custom_call.1} parent=0
    #allocation7 [shape = 'u8[32768]{0}', space=vmem, size = 0x8000, scoped, tag = 'input window, operand 0']
    #allocation8 [shape = 'u8[1024]{0}', space=vmem, size = 0x400, scoped, tag = 'output window, operand 0, single buffered']
    #allocation9 [shape = 's32[2]{0}', space=sflag, size = 0x8, scoped, tag = 'scoped memory for tpu_custom_call.1']
    %18 = vsyncpa [#allocation9], 0
    loop: start=0, step=1, limit=4
    $region2: #{tpu_custom_call.1} parent=1 // loop_pre_header
      _
    $region3: #{tpu_custom_call.1} parent=1 // loop_header
      %s20 = sphi 0, %s24
      %p21 = scmp.ge.s32.totalorder %s20, 4
      %s30 = sphi 0, %s32
      %s33 = sphi 0, %s30
      %s34 = sphi 0, %s33
      %s50 = sphi 0, %s34
      %s54 = sphi 0, %s54
      %s56 = sphi 0, %s54
      %s57 = sphi 0, %s56
      %s71 = sphi 0, %s57
      %s75 = sphi 0, %s75
      %s77 = sphi 0, %s75
      %s78 = sphi 0, %s77
      %s92 = sphi 0, %s78
      %s96 = sphi 0, %s96
      %s98 = sphi 0, %s96
      %s99 = sphi 0, %s98
      %s113 = sphi 0, %s99
      %s117 = sphi 0, %s117
      %s119 = sphi 0, %s117
      %s120 = sphi 0, %s119
      %s134 = sphi 0, %s120
      %s138 = sphi 0, %s138
      %s140 = sphi 0, %s138
      %s141 = sphi 0, %s140
      %s155 = sphi 0, %s141
      %s159 = sphi 0, %s159
      %s161 = sphi 0, %s159
      %s162 = sphi 0, %s161
      %s176 = sphi 0, %s162
      %s180 = sphi 0, %s180
      %s182 = sphi 0, %s180
      %s183 = sphi 0, %s182
      %s197 = sphi 0, %s183
      %s201 = sphi 0, %s201
      %s203 = sphi 0, %s201
      %s204 = sphi 0, %s203
      %s218 = sphi 0, %s204
      %s222 = sphi 0, %s222
      %s224 = sphi 0, %s222
      %s225 = sphi 0, %s224
      %s239 = sphi 0, %s225
      %s243 = sphi 0, %s243
      %s245 = sphi 0, %s243
      %s246 = sphi 0, %s245
      %s260 = sphi 0, %s246
      %s264 = sphi 0, %s264
      %s266 = sphi 0, %s264
      %s267 = sphi 0, %s266
      %s281 = sphi 0, %s267
    $region4: #{tpu_custom_call.1} parent=1 // loop_header_branch
      %23 = sbr.rel (%p21) target = $region8
    $region5: #{tpu_custom_call.1} parent=1 // loop_body
      %s25 = ssub.s32 %s20, 1
      %s26 = ssub.s32 %s20, 2
      %s27 = sadd.s32 %s20, 1
      %s28 = ssub.s32 %s20, %s27
      %p29 = scmp.eq.s32.totalorder %s28, 0
      %s31 = sadd.s32 %s30, 1
      %s32 = scalar_select %p29, %s30, %s31
      %p35 = pneg %p29
      %p36 = scmp.eq.s32.totalorder %s20, 1
      %p37 = por %p35, %p36
      %p38 = scmp.ne.s32.totalorder %s30, %s33
      %p39 = scmp.eq.s32.totalorder %s20, 0
      %p40 = por %p38, %p39
      %p41 = scmp.ne.s32.totalorder %s30, %s33
      %p42 = scmp.eq.s32.totalorder %s25, 1
      %p43 = por %p41, %p42
      %p44 = scmp.ne.s32.totalorder %s33, %s34
      %p45 = scmp.eq.s32.totalorder %s25, 0
      %p46 = por %p44, %p45
      %p47 = scmp.ne.s32.totalorder %s33, %s34
      %p48 = scmp.eq.s32.totalorder %s26, 1
      %p49 = por %p47, %p48
      %p51 = scmp.ne.s32.totalorder %s34, %s50
      %p52 = scmp.eq.s32.totalorder %s26, 0
      %p53 = por %p51, %p52
      %s55 = sadd.s32 %s54, 1
      %p58 = scmp.eq.s32.totalorder %s20, 1
      %p59 = scmp.ne.s32.totalorder %s54, %s56
      %p60 = scmp.eq.s32.totalorder %s20, 0
      %p61 = por %p59, %p60
      %p62 = scmp.ne.s32.totalorder %s54, %s56
      %p63 = scmp.eq.s32.totalorder %s25, 1
      %p64 = por %p62, %p63
      %p65 = scmp.ne.s32.totalorder %s56, %s57
      %p66 = scmp.eq.s32.totalorder %s25, 0
      %p67 = por %p65, %p66
      %p68 = scmp.ne.s32.totalorder %s56, %s57
      %p69 = scmp.eq.s32.totalorder %s26, 1
      %p70 = por %p68, %p69
      %p72 = scmp.ne.s32.totalorder %s57, %s71
      %p73 = scmp.eq.s32.totalorder %s26, 0
      %p74 = por %p72, %p73
      %s76 = sadd.s32 %s75, 1
      %p79 = scmp.eq.s32.totalorder %s20, 1
      %p80 = scmp.ne.s32.totalorder %s75, %s77
      %p81 = scmp.eq.s32.totalorder %s20, 0
      %p82 = por %p80, %p81
      %p83 = scmp.ne.s32.totalorder %s75, %s77
      %p84 = scmp.eq.s32.totalorder %s25, 1
      %p85 = por %p83, %p84
      %p86 = scmp.ne.s32.totalorder %s77, %s78
      %p87 = scmp.eq.s32.totalorder %s25, 0
      %p88 = por %p86, %p87
      %p89 = scmp.ne.s32.totalorder %s77, %s78
      %p90 = scmp.eq.s32.totalorder %s26, 1
      %p91 = por %p89, %p90
      %p93 = scmp.ne.s32.totalorder %s78, %s92
      %p94 = scmp.eq.s32.totalorder %s26, 0
      %p95 = por %p93, %p94
      %s97 = sadd.s32 %s96, 1
      %p100 = scmp.eq.s32.totalorder %s20, 1
      %p101 = scmp.ne.s32.totalorder %s96, %s98
      %p102 = scmp.eq.s32.totalorder %s20, 0
      %p103 = por %p101, %p102
      %p104 = scmp.ne.s32.totalorder %s96, %s98
      %p105 = scmp.eq.s32.totalorder %s25, 1
      %p106 = por %p104, %p105
      %p107 = scmp.ne.s32.totalorder %s98, %s99
      %p108 = scmp.eq.s32.totalorder %s25, 0
      %p109 = por %p107, %p108
      %p110 = scmp.ne.s32.totalorder %s98, %s99
      %p111 = scmp.eq.s32.totalorder %s26, 1
      %p112 = por %p110, %p111
      %p114 = scmp.ne.s32.totalorder %s99, %s113
      %p115 = scmp.eq.s32.totalorder %s26, 0
      %p116 = por %p114, %p115
      %s118 = sadd.s32 %s117, 1
      %p121 = scmp.eq.s32.totalorder %s20, 1
      %p122 = scmp.ne.s32.totalorder %s117, %s119
      %p123 = scmp.eq.s32.totalorder %s20, 0
      %p124 = por %p122, %p123
      %p125 = scmp.ne.s32.totalorder %s117, %s119
      %p126 = scmp.eq.s32.totalorder %s25, 1
      %p127 = por %p125, %p126
      %p128 = scmp.ne.s32.totalorder %s119, %s120
      %p129 = scmp.eq.s32.totalorder %s25, 0
      %p130 = por %p128, %p129
      %p131 = scmp.ne.s32.totalorder %s119, %s120
      %p132 = scmp.eq.s32.totalorder %s26, 1
      %p133 = por %p131, %p132
      %p135 = scmp.ne.s32.totalorder %s120, %s134
      %p136 = scmp.eq.s32.totalorder %s26, 0
      %p137 = por %p135, %p136
      %s139 = sadd.s32 %s138, 1
      %p142 = scmp.eq.s32.totalorder %s20, 1
      %p143 = scmp.ne.s32.totalorder %s138, %s140
      %p144 = scmp.eq.s32.totalorder %s20, 0
      %p145 = por %p143, %p144
      %p146 = scmp.ne.s32.totalorder %s138, %s140
      %p147 = scmp.eq.s32.totalorder %s25, 1
      %p148 = por %p146, %p147
      %p149 = scmp.ne.s32.totalorder %s140, %s141
      %p150 = scmp.eq.s32.totalorder %s25, 0
      %p151 = por %p149, %p150
      %p152 = scmp.ne.s32.totalorder %s140, %s141
      %p153 = scmp.eq.s32.totalorder %s26, 1
      %p154 = por %p152, %p153
      %p156 = scmp.ne.s32.totalorder %s141, %s155
      %p157 = scmp.eq.s32.totalorder %s26, 0
      %p158 = por %p156, %p157
      %s160 = sadd.s32 %s159, 1
      %p163 = scmp.eq.s32.totalorder %s20, 1
      %p164 = scmp.ne.s32.totalorder %s159, %s161
      %p165 = scmp.eq.s32.totalorder %s20, 0
      %p166 = por %p164, %p165
      %p167 = scmp.ne.s32.totalorder %s159, %s161
      %p168 = scmp.eq.s32.totalorder %s25, 1
      %p169 = por %p167, %p168
      %p170 = scmp.ne.s32.totalorder %s161, %s162
      %p171 = scmp.eq.s32.totalorder %s25, 0
      %p172 = por %p170, %p171
      %p173 = scmp.ne.s32.totalorder %s161, %s162
      %p174 = scmp.eq.s32.totalorder %s26, 1
      %p175 = por %p173, %p174
      %p177 = scmp.ne.s32.totalorder %s162, %s176
      %p178 = scmp.eq.s32.totalorder %s26, 0
      %p179 = por %p177, %p178
      %s181 = sadd.s32 %s180, 1
      %p184 = scmp.eq.s32.totalorder %s20, 1
      %p185 = scmp.ne.s32.totalorder %s180, %s182
      %p186 = scmp.eq.s32.totalorder %s20, 0
      %p187 = por %p185, %p186
      %p188 = scmp.ne.s32.totalorder %s180, %s182
      %p189 = scmp.eq.s32.totalorder %s25, 1
      %p190 = por %p188, %p189
      %p191 = scmp.ne.s32.totalorder %s182, %s183
      %p192 = scmp.eq.s32.totalorder %s25, 0
      %p193 = por %p191, %p192
      %p194 = scmp.ne.s32.totalorder %s182, %s183
      %p195 = scmp.eq.s32.totalorder %s26, 1
      %p196 = por %p194, %p195
      %p198 = scmp.ne.s32.totalorder %s183, %s197
      %p199 = scmp.eq.s32.totalorder %s26, 0
      %p200 = por %p198, %p199
      %s202 = sadd.s32 %s201, 1
      %p205 = scmp.eq.s32.totalorder %s20, 1
      %p206 = scmp.ne.s32.totalorder %s201, %s203
      %p207 = scmp.eq.s32.totalorder %s20, 0
      %p208 = por %p206, %p207
      %p209 = scmp.ne.s32.totalorder %s201, %s203
      %p210 = scmp.eq.s32.totalorder %s25, 1
      %p211 = por %p209, %p210
      %p212 = scmp.ne.s32.totalorder %s203, %s204
      %p213 = scmp.eq.s32.totalorder %s25, 0
      %p214 = por %p212, %p213
      %p215 = scmp.ne.s32.totalorder %s203, %s204
      %p216 = scmp.eq.s32.totalorder %s26, 1
      %p217 = por %p215, %p216
      %p219 = scmp.ne.s32.totalorder %s204, %s218
      %p220 = scmp.eq.s32.totalorder %s26, 0
      %p221 = por %p219, %p220
      %s223 = sadd.s32 %s222, 1
      %p226 = scmp.eq.s32.totalorder %s20, 1
      %p227 = scmp.ne.s32.totalorder %s222, %s224
      %p228 = scmp.eq.s32.totalorder %s20, 0
      %p229 = por %p227, %p228
      %p230 = scmp.ne.s32.totalorder %s222, %s224
      %p231 = scmp.eq.s32.totalorder %s25, 1
      %p232 = por %p230, %p231
      %p233 = scmp.ne.s32.totalorder %s224, %s225
      %p234 = scmp.eq.s32.totalorder %s25, 0
      %p235 = por %p233, %p234
      %p236 = scmp.ne.s32.totalorder %s224, %s225
      %p237 = scmp.eq.s32.totalorder %s26, 1
      %p238 = por %p236, %p237
      %p240 = scmp.ne.s32.totalorder %s225, %s239
      %p241 = scmp.eq.s32.totalorder %s26, 0
      %p242 = por %p240, %p241
      %s244 = sadd.s32 %s243, 1
      %p247 = scmp.eq.s32.totalorder %s20, 1
      %p248 = scmp.ne.s32.totalorder %s243, %s245
      %p249 = scmp.eq.s32.totalorder %s20, 0
      %p250 = por %p248, %p249
      %p251 = scmp.ne.s32.totalorder %s243, %s245
      %p252 = scmp.eq.s32.totalorder %s25, 1
      %p253 = por %p251, %p252
      %p254 = scmp.ne.s32.totalorder %s245, %s246
      %p255 = scmp.eq.s32.totalorder %s25, 0
      %p256 = por %p254, %p255
      %p257 = scmp.ne.s32.totalorder %s245, %s246
      %p258 = scmp.eq.s32.totalorder %s26, 1
      %p259 = por %p257, %p258
      %p261 = scmp.ne.s32.totalorder %s246, %s260
      %p262 = scmp.eq.s32.totalorder %s26, 0
      %p263 = por %p261, %p262
      %s265 = sadd.s32 %s264, 1
      %p268 = scmp.eq.s32.totalorder %s20, 1
      %p269 = scmp.ne.s32.totalorder %s264, %s266
      %p270 = scmp.eq.s32.totalorder %s20, 0
      %p271 = por %p269, %p270
      %p272 = scmp.ne.s32.totalorder %s264, %s266
      %p273 = scmp.eq.s32.totalorder %s25, 1
      %p274 = por %p272, %p273
      %p275 = scmp.ne.s32.totalorder %s266, %s267
      %p276 = scmp.eq.s32.totalorder %s25, 0
      %p277 = por %p275, %p276
      %p278 = scmp.ne.s32.totalorder %s266, %s267
      %p279 = scmp.eq.s32.totalorder %s26, 1
      %p280 = por %p278, %p279
      %p282 = scmp.ne.s32.totalorder %s267, %s281
      %p283 = scmp.eq.s32.totalorder %s26, 0
      %p284 = por %p282, %p283
      %p285 = scmp.le.s32.totalorder 1, %s20
      %p286 = scmp.lt.s32.totalorder %s20, 3
      %p287 = pnand %p285, %p286
      %p288 = pneg %p287
      // Predicated region
      $region9: #{tpu_custom_call.1} parent=5 // pred_check
        _
      $region10: #{tpu_custom_call.1} parent=5 // pred_check_branch
        %290 = sbr.rel (%p287) target = $region12
      $region11: #{tpu_custom_call.1} parent=5 // pred_region
        %s291 = ssub.s32 %s20, 1
        // Predicated region
        $region13: #{tpu_custom_call.1} parent=11 // pred_check
          %p292 = pneg %p67
        $region14: #{tpu_custom_call.1} parent=11 // pred_check_branch
          %294 = sbr.rel (%p292) target = $region16
        $region15: #{tpu_custom_call.1} parent=11 // pred_region
          _
        $region16: #{tpu_custom_call.1} parent=11 // pred_fallthru
          _
        // Predicated region
        $region17: #{tpu_custom_call.1} parent=11 // pred_check
          %p295 = pneg %p88
        $region18: #{tpu_custom_call.1} parent=11 // pred_check_branch
          %297 = sbr.rel (%p295) target = $region20
        $region19: #{tpu_custom_call.1} parent=11 // pred_region
          _
        $region20: #{tpu_custom_call.1} parent=11 // pred_fallthru
          _
        // Predicated region
        $region21: #{tpu_custom_call.1} parent=11 // pred_check
          %p298 = pneg %p109
        $region22: #{tpu_custom_call.1} parent=11 // pred_check_branch
          %300 = sbr.rel (%p298) target = $region24
        $region23: #{tpu_custom_call.1} parent=11 // pred_region
          _
        $region24: #{tpu_custom_call.1} parent=11 // pred_fallthru
          _
        // Predicated region
        $region25: #{tpu_custom_call.1} parent=11 // pred_check
          %p301 = pneg %p130
        $region26: #{tpu_custom_call.1} parent=11 // pred_check_branch
          %303 = sbr.rel (%p301) target = $region28
        $region27: #{tpu_custom_call.1} parent=11 // pred_region
          _
        $region28: #{tpu_custom_call.1} parent=11 // pred_fallthru
          _
        // Predicated region
        $region29: #{tpu_custom_call.1} parent=11 // pred_check
          %p304 = pneg %p151
        $region30: #{tpu_custom_call.1} parent=11 // pred_check_branch
          %306 = sbr.rel (%p304) target = $region32
        $region31: #{tpu_custom_call.1} parent=11 // pred_region
          _
        $region32: #{tpu_custom_call.1} parent=11 // pred_fallthru
          _
        // Predicated region
        $region33: #{tpu_custom_call.1} parent=11 // pred_check
          %p307 = pneg %p172
        $region34: #{tpu_custom_call.1} parent=11 // pred_check_branch
          %309 = sbr.rel (%p307) target = $region36
        $region35: #{tpu_custom_call.1} parent=11 // pred_region
          _
        $region36: #{tpu_custom_call.1} parent=11 // pred_fallthru
          _
        // Predicated region
        $region37: #{tpu_custom_call.1} parent=11 // pred_check
          %p310 = pneg %p193
        $region38: #{tpu_custom_call.1} parent=11 // pred_check_branch
          %312 = sbr.rel (%p310) target = $region40
        $region39: #{tpu_custom_call.1} parent=11 // pred_region
          _
        $region40: #{tpu_custom_call.1} parent=11 // pred_fallthru
          _
        // Predicated region
        $region41: #{tpu_custom_call.1} parent=11 // pred_check
          %p313 = pneg %p214
        $region42: #{tpu_custom_call.1} parent=11 // pred_check_branch
          %315 = sbr.rel (%p313) target = $region44
        $region43: #{tpu_custom_call.1} parent=11 // pred_region
          _
        $region44: #{tpu_custom_call.1} parent=11 // pred_fallthru
          _
        // Predicated region
        $region45: #{tpu_custom_call.1} parent=11 // pred_check
          %p316 = pneg %p235
        $region46: #{tpu_custom_call.1} parent=11 // pred_check_branch
          %318 = sbr.rel (%p316) target = $region48
        $region47: #{tpu_custom_call.1} parent=11 // pred_region
          _
        $region48: #{tpu_custom_call.1} parent=11 // pred_fallthru
          _
        // Predicated region
        $region49: #{tpu_custom_call.1} parent=11 // pred_check
          %p319 = pneg %p256
        $region50: #{tpu_custom_call.1} parent=11 // pred_check_branch
          %321 = sbr.rel (%p319) target = $region52
        $region51: #{tpu_custom_call.1} parent=11 // pred_region
          _
        $region52: #{tpu_custom_call.1} parent=11 // pred_fallthru
          _
      $region12: #{tpu_custom_call.1} parent=5 // pred_fallthru
        _
      %p322 = scmp.lt.s32.totalorder %s20, 2
      // Predicated region
      $region53: #{tpu_custom_call.1} parent=5 // pred_check
        %p323 = pneg %p322
      $region54: #{tpu_custom_call.1} parent=5 // pred_check_branch
        %325 = sbr.rel (%p323) target = $region56
      $region55: #{tpu_custom_call.1} parent=5 // pred_region
        // Predicated region
        $region57: #{tpu_custom_call.1} parent=55 // pred_check
          %p326 = pneg %p40
        $region58: #{tpu_custom_call.1} parent=55 // pred_check_branch
          %328 = sbr.rel (%p326) target = $region60
        $region59: #{tpu_custom_call.1} parent=55 // pred_region
          %s329 = sand.u32 %s30, 1
          %s330 = sand.u32 %s30, 1
          %s331 = smul.addr %s330, 32
          %s332 = scalar_lea.vmem [#allocation7], %s331
          %s333 = smul.addr %s20, 8
          %s334 = scalar_lea.vmem %s0, %s333
          // Predicated region
          $region61: #{tpu_custom_call.1} parent=59 // pred_check
            _
          $region62: #{tpu_custom_call.1} parent=59 // pred_check_branch
            %336 = sbr.rel (0) target = $region64
          $region63: #{tpu_custom_call.1} parent=59 // pred_region
            // Predicated region
            $region65: #{tpu_custom_call.1} parent=63 // pred_check
              _
            $region66: #{tpu_custom_call.1} parent=63 // pred_check_branch
              %338 = sbr.rel (0) target = $region68
            $region67: #{tpu_custom_call.1} parent=63 // pred_region
              // Predicated region
              $region80: #{tpu_custom_call.1} parent=67 // pred_check
                _
              $region81: #{tpu_custom_call.1} parent=67 // pred_check_branch
                %360 = sbr.rel (0) target = $region83
              $region82: #{tpu_custom_call.1} parent=67 // pred_region
                loop: start=0, step=1, limit=1
                $region84: #{tpu_custom_call.1} parent=82 // loop_pre_header
                  _
                $region85: #{tpu_custom_call.1} parent=82 // loop_header
                  %s362 = sphi 0, %s366
                  %p363 = scmp.ge.s32.totalorder %s362, 1
                  %s367 = sphi %s334, %s334
                  %s368 = sphi %s332, %s332
                $region86: #{tpu_custom_call.1} parent=82 // loop_header_branch
                  %365 = sbr.rel (%p363) target = $region90
                $region87: #{tpu_custom_call.1} parent=82 // loop_body
                  %v369 = vld [vmem:[%s367] sm:$0xff]
                  %370 = vst [vmem:[%s368] sm:$0xff] %v369
                  %v371 = vld [vmem:[%s367 + $0x10] sm:$0xff]
                  %372 = vst [vmem:[%s368 + $0x8] sm:$0xff] %v371
                  %v373 = vld [vmem:[%s367 + $0x20] sm:$0xff]
                  %374 = vst [vmem:[%s368 + $0x10] sm:$0xff] %v373
                  %v375 = vld [vmem:[%s367 + $0x30] sm:$0xff]
                  %376 = vst [vmem:[%s368 + $0x18] sm:$0xff] %v375
                $region88: #{tpu_custom_call.1} parent=82 // loop_footer
                  %s366 = sadd.s32 1, %s362
                $region89: #{tpu_custom_call.1} parent=82 // loop_footer_branch
                  %361 = sbr.rel target = $region85
                $region90: #{tpu_custom_call.1} parent=82 // loop_exit
                  _
              $region83: #{tpu_custom_call.1} parent=67 // pred_fallthru
                _
              // Predicated region
              $region91: #{tpu_custom_call.1} parent=67 // pred_check
                _
              $region92: #{tpu_custom_call.1} parent=67 // pred_check_branch
                %378 = sbr.rel target = $region94
              $region93: #{tpu_custom_call.1} parent=67 // pred_region
                _
              $region94: #{tpu_custom_call.1} parent=67 // pred_fallthru
                _
            $region68: #{tpu_custom_call.1} parent=63 // pred_fallthru
              _
            // Predicated region
            $region69: #{tpu_custom_call.1} parent=63 // pred_check
              _
            $region70: #{tpu_custom_call.1} parent=63 // pred_check_branch
              %340 = sbr.rel target = $region72
            $region71: #{tpu_custom_call.1} parent=63 // pred_region
              %s342 = ssub.s32 256, 1
              loop: start=0, step=1, limit=1
              $region73: #{tpu_custom_call.1} parent=71 // loop_pre_header
                _
              $region74: #{tpu_custom_call.1} parent=71 // loop_header
                %s344 = sphi 0, %s348
                %p345 = scmp.ge.s32.totalorder %s344, 1
                %s349 = sphi %s334, %s334
                %s350 = sphi %s332, %s332
              $region75: #{tpu_custom_call.1} parent=71 // loop_header_branch
                %347 = sbr.rel (%p345) target = $region79
              $region76: #{tpu_custom_call.1} parent=71 // loop_body
                %v351 = vld [vmem:[%s349] sm:%s342]
                %352 = vst [vmem:[%s350] sm:%s342] %v351
                %v353 = vld [vmem:[%s349 + $0x10] sm:%s342]
                %354 = vst [vmem:[%s350 + $0x8] sm:%s342] %v353
                %v355 = vld [vmem:[%s349 + $0x20] sm:%s342]
                %356 = vst [vmem:[%s350 + $0x10] sm:%s342] %v355
                %v357 = vld [vmem:[%s349 + $0x30] sm:%s342]
                %358 = vst [vmem:[%s350 + $0x18] sm:%s342] %v357
              $region77: #{tpu_custom_call.1} parent=71 // loop_footer
                %s348 = sadd.s32 1, %s344
              $region78: #{tpu_custom_call.1} parent=71 // loop_footer_branch
                %343 = sbr.rel target = $region74
              $region79: #{tpu_custom_call.1} parent=71 // loop_exit
                _
            $region72: #{tpu_custom_call.1} parent=63 // pred_fallthru
              _
          $region64: #{tpu_custom_call.1} parent=59 // pred_fallthru
            _
          %379 = vnop
        $region60: #{tpu_custom_call.1} parent=55 // pred_fallthru
          _
      $region56: #{tpu_custom_call.1} parent=5 // pred_fallthru
        _
      %p380 = scmp.le.s32.totalorder 1, %s20
      %p381 = scmp.lt.s32.totalorder %s20, 3
      %p382 = pnand %p380, %p381
      %p383 = pneg %p382
      // Predicated region
      $region95: #{tpu_custom_call.1} parent=5 // pred_check
        _
      $region96: #{tpu_custom_call.1} parent=5 // pred_check_branch
        %385 = sbr.rel (%p382) target = $region98
      $region97: #{tpu_custom_call.1} parent=5 // pred_region
        %s386 = ssub.s32 %s20, 1
        %s387 = sand.u32 %s33, 1
        %s388 = sand.u32 %s33, 1
        %s389 = smul.addr %s388, 32
        %s390 = scalar_lea.vmem [#allocation7], %s389
        // Predicated region
        $region99: #{tpu_custom_call.1} parent=97 // pred_check
          %p391 = pneg %p46
        $region100: #{tpu_custom_call.1} parent=97 // pred_check_branch
          %393 = sbr.rel (%p391) target = $region102
        $region101: #{tpu_custom_call.1} parent=97 // pred_region
          _
        $region102: #{tpu_custom_call.1} parent=97 // pred_fallthru
          _
        %s394 = sand.u32 %s33, 1
        %s395 = sand.u32 %s33, 1
        %s396 = smul.addr %s395, 32
        %s397 = scalar_lea.vmem [#allocation7], %s396
        %p398 = pneg %p46
        %p399 = pneg %p43
        %p400 = pneg %p67
        %p401 = pneg %p64
        %p402 = pneg %p88
        %p403 = pneg %p85
        %p404 = pneg %p109
        %p405 = pneg %p106
        %p406 = pneg %p130
        %p407 = pneg %p127
        %p408 = pneg %p151
        %p409 = pneg %p148
        %p410 = pneg %p172
        %p411 = pneg %p169
        %p412 = pneg %p193
        %p413 = pneg %p190
        %p414 = pneg %p214
        %p415 = pneg %p211
        %p416 = pneg %p235
        %p417 = pneg %p232
        %p418 = pneg %p256
        %p419 = pneg %p253
        %p420 = pneg %p277
        %p421 = pneg %p274
        %p423 = scmp.eq.s32.totalorder %s25, 0
        // Predicated region
        $region103: #{tpu_custom_call.1} parent=97 // pred_check
          %p424 = pneg %p423
        $region104: #{tpu_custom_call.1} parent=97 // pred_check_branch
          %426 = sbr.rel (%p424) target = $region106
        $region105: #{tpu_custom_call.1} parent=97 // pred_region
          %vm427 = vcmask 7168
          %428 = vst.msk [vmem:[#allocation2] sm:$0xff] %vm427, 0.0
          %429 = vst.msk [vmem:[#allocation2 + $0x8] sm:$0xff] %vm427, 0.0
          %430 = vst.msk [vmem:[#allocation2 + $0x10] sm:$0xff] %vm427, 0.0
          %431 = vst.msk [vmem:[#allocation2 + $0x18] sm:$0xff] %vm427, 0.0
          %432 = vst.msk [vmem:[#allocation2 + $0x20] sm:$0xff] %vm427, 0.0
          %433 = vst.msk [vmem:[#allocation2 + $0x28] sm:$0xff] %vm427, 0.0
          %434 = vst.msk [vmem:[#allocation2 + $0x30] sm:$0xff] %vm427, 0.0
          %435 = vst.msk [vmem:[#allocation2 + $0x38] sm:$0xff] %vm427, 0.0
          %436 = vst.msk [vmem:[#allocation3] sm:$0xff] %vm427, 0.0
          %437 = vst.msk [vmem:[#allocation3 + $0x8] sm:$0xff] %vm427, 0.0
          %438 = vst.msk [vmem:[#allocation3 + $0x10] sm:$0xff] %vm427, 0.0
          %439 = vst.msk [vmem:[#allocation3 + $0x18] sm:$0xff] %vm427, 0.0
          %440 = vst.msk [vmem:[#allocation3 + $0x20] sm:$0xff] %vm427, 0.0
          %441 = vst.msk [vmem:[#allocation3 + $0x28] sm:$0xff] %vm427, 0.0
          %442 = vst.msk [vmem:[#allocation3 + $0x30] sm:$0xff] %vm427, 0.0
          %443 = vst.msk [vmem:[#allocation3 + $0x38] sm:$0xff] %vm427, 0.0
        $region106: #{tpu_custom_call.1} parent=97 // pred_fallthru
          _
        %v444 = vld [vmem:[%s390] sm:$0xff]
        %v445 = vld [vmem:[%s390 + $0x8] sm:$0xff]
        %v446 = vld [vmem:[%s390 + $0x10] sm:$0xff]
        %v447 = vld [vmem:[%s390 + $0x18] sm:$0xff]
        %v448 = vpack.c.bf16 %v445, %v444
        %v449 = vpack.c.bf16 %v447, %v446
        %v450 = vld [vmem:[%s1] sm:$0xf]
        %v451 = vld [vmem:[%s1 + $0x4] sm:$0xf]
        %v452 = vld [vmem:[%s1 + $0x8] sm:$0xf]
        %v453 = vld [vmem:[%s1 + $0xc] sm:$0xf]
        %v454 = vld [vmem:[%s1 + $0x10] sm:$0xf]
        %v455 = vld [vmem:[%s1 + $0x14] sm:$0xf]
        %v456 = vld [vmem:[%s1 + $0x18] sm:$0xf]
        %v457 = vld [vmem:[%s1 + $0x1c] sm:$0xf]
        %v458 = vld [vmem:[%s2] sm:$0xff]
        %v459 = vld [vmem:[%s2 + $0x8] sm:$0xff]
        %v460 = vld [vmem:[%s2 + $0x10] sm:$0xff]
        %v461 = vld [vmem:[%s2 + $0x18] sm:$0xff]
        %v462 = vld [vmem:[%s2 + $0x20] sm:$0xff]
        %v463 = vld [vmem:[%s2 + $0x28] sm:$0xff]
        %v464 = vld [vmem:[%s2 + $0x30] sm:$0xff]
        %v465 = vld [vmem:[%s2 + $0x38] sm:$0xff]
        %467 = vset.pattern.permute.xlu0 0
        %468 = vperm.xlu0 %467, %v458
        %v469 = vpop.permute.xlu0 %468
        %472 = vset.pattern.permute.xlu0 0
        %473 = vperm.xlu0 %472, %v459
        %v474 = vpop.permute.xlu0 %473
        %477 = vset.pattern.permute.xlu0 0
        %478 = vperm.xlu0 %477, %v460
        %v479 = vpop.permute.xlu0 %478
        %482 = vset.pattern.permute.xlu0 0
        %483 = vperm.xlu0 %482, %v461
        %v484 = vpop.permute.xlu0 %483
        %487 = vset.pattern.permute.xlu0 0
        %488 = vperm.xlu0 %487, %v462
        %v489 = vpop.permute.xlu0 %488
        %492 = vset.pattern.permute.xlu0 0
        %493 = vperm.xlu0 %492, %v463
        %v494 = vpop.permute.xlu0 %493
        %497 = vset.pattern.permute.xlu0 0
        %498 = vperm.xlu0 %497, %v464
        %v499 = vpop.permute.xlu0 %498
        %502 = vset.pattern.permute.xlu0 0
        %503 = vperm.xlu0 %502, %v465
        %v504 = vpop.permute.xlu0 %503
        %v514 = vunpack.c.l.b16 %v450
        %v515 = vunpack.c.l.b16 %v451
        %v516 = vunpack.c.l.b16 %v452
        %v517 = vunpack.c.l.b16 %v453
        %v518 = vunpack.c.l.b16 %v454
        %v519 = vunpack.c.l.b16 %v455
        %v520 = vunpack.c.l.b16 %v456
        %v521 = vunpack.c.l.b16 %v457
        %v522 = vpack.c.b16 %v515, %v514
        %v523 = vpack.c.b16 %v517, %v516
        %v524 = vpack.c.b16 %v519, %v518
        %v525 = vpack.c.b16 %v521, %v520
        %vm526 = vcmask 261120
        %v528 = vsel %vm526, %v522, 0
        %v531 = vsel %vm526, %v523, 0
        %v534 = vsel %vm526, %v524, 0
        %v537 = vsel %vm526, %v525, 0
        %539 = vmatprep.subr.bf16.mxu0 0
        %540 = vmatpush1.bf16.msra.mxu0 0
        %541 = vmatprep.subr.bf16.mxu0 0
        %542 = vmatpush1.bf16.msra.mxu0 0
        %543 = vmatprep.subr.bf16.mxu0 0
        %544 = vmatpush1.bf16.msra.mxu0 0
        %545 = vmatprep.subr.bf16.mxu0 0
        %546 = vmatpush1.bf16.msra.mxu0 0
        %547 = vmatprep.subr.bf16.mxu0 0
        %548 = vmatpush1.bf16.msra.mxu0 0
        %549 = vmatprep.subr.bf16.mxu0 0
        %550 = vmatpush1.bf16.msra.mxu0 0
        %551 = vmatprep.subr.bf16.mxu0 0
        %552 = vmatpush1.bf16.msra.mxu0 %v449
        %553 = vmatprep.subr.bf16.mxu0 0
        %554 = vmatpush1.bf16.msra.mxu0 %v448
        %555 = vmatprep.subr.bf16.mxu0 0
        %556 = vmatpush2.bf16.msra.mxu0 0
        %557 = vmatprep.subr.bf16.mxu0 0
        %558 = vmatpush2.bf16.msra.mxu0 0
        %559 = vmatprep.subr.bf16.mxu0 0
        %560 = vmatpush2.bf16.msra.mxu0 0
        %561 = vmatprep.subr.bf16.mxu0 0
        %562 = vmatpush2.bf16.msra.mxu0 0
        %563 = vmatprep.subr.bf16.mxu0 0
        %564 = vmatpush2.bf16.msra.mxu0 0
        %565 = vmatprep.subr.bf16.mxu0 0
        %566 = vmatpush2.bf16.msra.mxu0 0
        %567 = vmatprep.subr.bf16.mxu0 0
        %568 = vmatpush2.bf16.msra.mxu0 0
        %569 = vmatprep.subr.bf16.mxu0 0
        %570 = vmatpush2.bf16.msra.mxu0 0
        %571 = vmatprep.mubr.bf16.mxu0 0
        %572 = vmatmul.mubr.bf16.gmra.mxu0 %v528
        %v573 = vpop.f32.mrf.mxu0
        %v574 = vadd.f32 %v469, %v573
        %v575 = vpop.f32.mrf.mxu0
        %v576 = vpop.f32.mrf.mxu0
        %v577 = vadd.f32 %v474, %v576
        %v578 = vpop.f32.mrf.mxu0
        %579 = vmatprep.mubr.bf16.mxu0 0
        %580 = vmatmul.mubr.bf16.gmra.mxu0 %v531
        %v581 = vpop.f32.mrf.mxu0
        %v582 = vadd.f32 %v479, %v581
        %v583 = vpop.f32.mrf.mxu0
        %v584 = vpop.f32.mrf.mxu0
        %v585 = vadd.f32 %v484, %v584
        %v586 = vpop.f32.mrf.mxu0
        %587 = vmatprep.mubr.bf16.mxu0 0
        %588 = vmatmul.mubr.bf16.gmra.mxu0 %v534
        %v589 = vpop.f32.mrf.mxu0
        %v590 = vadd.f32 %v489, %v589
        %v591 = vpop.f32.mrf.mxu0
        %v592 = vpop.f32.mrf.mxu0
        %v593 = vadd.f32 %v494, %v592
        %v594 = vpop.f32.mrf.mxu0
        %595 = vmatprep.mubr.bf16.mxu0 0
        %596 = vmatmul.mubr.bf16.gmra.mxu0 %v537
        %v597 = vpop.f32.mrf.mxu0
        %v598 = vadd.f32 %v499, %v597
        %v599 = vpop.f32.mrf.mxu0
        %v600 = vpop.f32.mrf.mxu0
        %v601 = vadd.f32 %v504, %v600
        %v602 = vpop.f32.mrf.mxu0
        %603 = vdwg.mxu0
        %v604 = vmax.f32 %v574, 0.0
        %v605 = vmax.f32 %v577, 0.0
        %v606 = vmax.f32 %v582, 0.0
        %v607 = vmax.f32 %v585, 0.0
        %v608 = vmax.f32 %v590, 0.0
        %v609 = vmax.f32 %v593, 0.0
        %v610 = vmax.f32 %v598, 0.0
        %v611 = vmax.f32 %v601, 0.0
        %s612 = smul.u32 %s25, 128
        %s613 = sshra.s32 %s612, 7
        %s614 = sand.u32 %s612, 127
        %s615 = smul.addr %s613, 8
        %s616 = scalar_lea.vmem [#allocation4], %s615
        %617 = vst [vmem:[%s616] sm:$0xff] %v604
        %618 = vst [vmem:[%s616 + $0x10] sm:$0xff] %v605
        %619 = vst [vmem:[%s616 + $0x20] sm:$0xff] %v606
        %620 = vst [vmem:[%s616 + $0x30] sm:$0xff] %v607
        %621 = vst [vmem:[%s616 + $0x40] sm:$0xff] %v608
        %622 = vst [vmem:[%s616 + $0x50] sm:$0xff] %v609
        %623 = vst [vmem:[%s616 + $0x60] sm:$0xff] %v610
        %624 = vst [vmem:[%s616 + $0x70] sm:$0xff] %v611
        %v625 = vld [vmem:[#allocation2] sm:$0xff]
        %v626 = vld [vmem:[#allocation2 + $0x8] sm:$0xff]
        %v627 = vld [vmem:[#allocation2 + $0x10] sm:$0xff]
        %v628 = vld [vmem:[#allocation2 + $0x18] sm:$0xff]
        %v629 = vld [vmem:[#allocation2 + $0x20] sm:$0xff]
        %v630 = vld [vmem:[#allocation2 + $0x28] sm:$0xff]
        %v631 = vld [vmem:[#allocation2 + $0x30] sm:$0xff]
        %v632 = vld [vmem:[#allocation2 + $0x38] sm:$0xff]
        %633 = vadd.xlane.f32.xlu0 %v604
        %v634 = vpop.xlane.xlu0 %633
        %635 = vadd.xlane.f32.xlu0 %v605
        %v636 = vpop.xlane.xlu0 %635
        %637 = vadd.xlane.f32.xlu0 %v606
        %v638 = vpop.xlane.xlu0 %637
        %639 = vadd.xlane.f32.xlu0 %v607
        %v640 = vpop.xlane.xlu0 %639
        %641 = vadd.xlane.f32.xlu0 %v608
        %v642 = vpop.xlane.xlu0 %641
        %643 = vadd.xlane.f32.xlu0 %v609
        %v644 = vpop.xlane.xlu0 %643
        %645 = vadd.xlane.f32.xlu0 %v610
        %v646 = vpop.xlane.xlu0 %645
        %647 = vadd.xlane.f32.xlu0 %v611
        %v648 = vpop.xlane.xlu0 %647
        %v649 = vadd.f32 %v625, %v634
        %v650 = vadd.f32 %v626, %v636
        %v651 = vadd.f32 %v627, %v638
        %v652 = vadd.f32 %v628, %v640
        %v653 = vadd.f32 %v629, %v642
        %v654 = vadd.f32 %v630, %v644
        %v655 = vadd.f32 %v631, %v646
        %v656 = vadd.f32 %v632, %v648
        %vm657 = vcmask 7168
        %658 = vst.msk [vmem:[#allocation2] sm:$0xff] %vm657, %v649
        %659 = vst.msk [vmem:[#allocation2 + $0x8] sm:$0xff] %vm657, %v650
        %660 = vst.msk [vmem:[#allocation2 + $0x10] sm:$0xff] %vm657, %v651
        %661 = vst.msk [vmem:[#allocation2 + $0x18] sm:$0xff] %vm657, %v652
        %662 = vst.msk [vmem:[#allocation2 + $0x20] sm:$0xff] %vm657, %v653
        %663 = vst.msk [vmem:[#allocation2 + $0x28] sm:$0xff] %vm657, %v654
        %664 = vst.msk [vmem:[#allocation2 + $0x30] sm:$0xff] %vm657, %v655
        %665 = vst.msk [vmem:[#allocation2 + $0x38] sm:$0xff] %vm657, %v656
        %v666 = vld [vmem:[#allocation3] sm:$0xff]
        %v667 = vld [vmem:[#allocation3 + $0x8] sm:$0xff]
        %v668 = vld [vmem:[#allocation3 + $0x10] sm:$0xff]
        %v669 = vld [vmem:[#allocation3 + $0x18] sm:$0xff]
        %v670 = vld [vmem:[#allocation3 + $0x20] sm:$0xff]
        %v671 = vld [vmem:[#allocation3 + $0x28] sm:$0xff]
        %v672 = vld [vmem:[#allocation3 + $0x30] sm:$0xff]
        %v673 = vld [vmem:[#allocation3 + $0x38] sm:$0xff]
        %v674 = vmul.f32 %v604, %v604
        %v675 = vmul.f32 %v605, %v605
        %v676 = vmul.f32 %v606, %v606
        %v677 = vmul.f32 %v607, %v607
        %v678 = vmul.f32 %v608, %v608
        %v679 = vmul.f32 %v609, %v609
        %v680 = vmul.f32 %v610, %v610
        %v681 = vmul.f32 %v611, %v611
        %682 = vadd.xlane.f32.xlu0 %v674
        %v683 = vpop.xlane.xlu0 %682
        %684 = vadd.xlane.f32.xlu0 %v675
        %v685 = vpop.xlane.xlu0 %684
        %686 = vadd.xlane.f32.xlu0 %v676
        %v687 = vpop.xlane.xlu0 %686
        %688 = vadd.xlane.f32.xlu0 %v677
        %v689 = vpop.xlane.xlu0 %688
        %690 = vadd.xlane.f32.xlu0 %v678
        %v691 = vpop.xlane.xlu0 %690
        %692 = vadd.xlane.f32.xlu0 %v679
        %v693 = vpop.xlane.xlu0 %692
        %694 = vadd.xlane.f32.xlu0 %v680
        %v695 = vpop.xlane.xlu0 %694
        %696 = vadd.xlane.f32.xlu0 %v681
        %v697 = vpop.xlane.xlu0 %696
        %v698 = vadd.f32 %v666, %v683
        %v699 = vadd.f32 %v667, %v685
        %v700 = vadd.f32 %v668, %v687
        %v701 = vadd.f32 %v669, %v689
        %v702 = vadd.f32 %v670, %v691
        %v703 = vadd.f32 %v671, %v693
        %v704 = vadd.f32 %v672, %v695
        %v705 = vadd.f32 %v673, %v697
        %706 = vst.msk [vmem:[#allocation3] sm:$0xff] %vm657, %v698
        %707 = vst.msk [vmem:[#allocation3 + $0x8] sm:$0xff] %vm657, %v699
        %708 = vst.msk [vmem:[#allocation3 + $0x10] sm:$0xff] %vm657, %v700
        %709 = vst.msk [vmem:[#allocation3 + $0x18] sm:$0xff] %vm657, %v701
        %710 = vst.msk [vmem:[#allocation3 + $0x20] sm:$0xff] %vm657, %v702
        %711 = vst.msk [vmem:[#allocation3 + $0x28] sm:$0xff] %vm657, %v703
        %712 = vst.msk [vmem:[#allocation3 + $0x30] sm:$0xff] %vm657, %v704
        %713 = vst.msk [vmem:[#allocation3 + $0x38] sm:$0xff] %vm657, %v705
        %p714 = scmp.eq.s32.totalorder %s25, 1
        // Predicated region
        $region107: #{tpu_custom_call.1} parent=97 // pred_check
          %p715 = pneg %p714
        $region108: #{tpu_custom_call.1} parent=97 // pred_check_branch
          %717 = sbr.rel (%p715) target = $region110
        $region109: #{tpu_custom_call.1} parent=97 // pred_region
          %v718 = vld [vmem:[#allocation2] sm:$0xff]
          %v719 = vld [vmem:[#allocation2 + $0x8] sm:$0xff]
          %v720 = vld [vmem:[#allocation2 + $0x10] sm:$0xff]
          %v721 = vld [vmem:[#allocation2 + $0x18] sm:$0xff]
          %v722 = vld [vmem:[#allocation2 + $0x20] sm:$0xff]
          %v723 = vld [vmem:[#allocation2 + $0x28] sm:$0xff]
          %v724 = vld [vmem:[#allocation2 + $0x30] sm:$0xff]
          %v725 = vld [vmem:[#allocation2 + $0x38] sm:$0xff]
          %v726 = vld [vmem:[#allocation3] sm:$0xff]
          %v727 = vld [vmem:[#allocation3 + $0x8] sm:$0xff]
          %v728 = vld [vmem:[#allocation3 + $0x10] sm:$0xff]
          %v729 = vld [vmem:[#allocation3 + $0x18] sm:$0xff]
          %v730 = vld [vmem:[#allocation3 + $0x20] sm:$0xff]
          %v731 = vld [vmem:[#allocation3 + $0x28] sm:$0xff]
          %v732 = vld [vmem:[#allocation3 + $0x30] sm:$0xff]
          %v733 = vld [vmem:[#allocation3 + $0x38] sm:$0xff]
          %v734 = vmul.f32 %v718, 0.00390625
          %v735 = vmul.f32 %v719, 0.00390625
          %v736 = vmul.f32 %v720, 0.00390625
          %v737 = vmul.f32 %v721, 0.00390625
          %v738 = vmul.f32 %v722, 0.00390625
          %v739 = vmul.f32 %v723, 0.00390625
          %v740 = vmul.f32 %v724, 0.00390625
          %v741 = vmul.f32 %v725, 0.00390625
          %v742 = vmul.f32 %v726, 0.00390625
          %v743 = vmul.f32 %v727, 0.00390625
          %v744 = vmul.f32 %v728, 0.00390625
          %v745 = vmul.f32 %v729, 0.00390625
          %v746 = vmul.f32 %v730, 0.00390625
          %v747 = vmul.f32 %v731, 0.00390625
          %v748 = vmul.f32 %v732, 0.00390625
          %v749 = vmul.f32 %v733, 0.00390625
          %v750 = vmul.f32 %v734, %v734
          %v751 = vmul.f32 %v735, %v735
          %v752 = vmul.f32 %v736, %v736
          %v753 = vmul.f32 %v737, %v737
          %v754 = vmul.f32 %v738, %v738
          %v755 = vmul.f32 %v739, %v739
          %v756 = vmul.f32 %v740, %v740
          %v757 = vmul.f32 %v741, %v741
          %v758 = vsub.f32 %v742, %v750
          %v759 = vsub.f32 %v743, %v751
          %v760 = vsub.f32 %v744, %v752
          %v761 = vsub.f32 %v745, %v753
          %v762 = vsub.f32 %v746, %v754
          %v763 = vsub.f32 %v747, %v755
          %v764 = vsub.f32 %v748, %v756
          %v765 = vsub.f32 %v749, %v757
          %v766 = vld [vmem:[%s3] sm:$0xff]
          %v767 = vld [vmem:[%s3 + $0x8] sm:$0xff]
          %v768 = vld [vmem:[%s3 + $0x10] sm:$0xff]
          %v769 = vld [vmem:[%s3 + $0x18] sm:$0xff]
          %v770 = vld [vmem:[%s3 + $0x20] sm:$0xff]
          %v771 = vld [vmem:[%s3 + $0x28] sm:$0xff]
          %v772 = vld [vmem:[%s3 + $0x30] sm:$0xff]
          %v773 = vld [vmem:[%s3 + $0x38] sm:$0xff]
          %v774 = vadd.f32 %v758, 1e-05
          %v775 = vadd.f32 %v759, 1e-05
          %v776 = vadd.f32 %v760, 1e-05
          %v777 = vadd.f32 %v761, 1e-05
          %v778 = vadd.f32 %v762, 1e-05
          %v779 = vadd.f32 %v763, 1e-05
          %v780 = vadd.f32 %v764, 1e-05
          %v781 = vadd.f32 %v765, 1e-05
          %v782 = vrsqrt.pop %v774
          %v783 = vrsqrt.pop %v775
          %v784 = vrsqrt.pop %v776
          %v785 = vrsqrt.pop %v777
          %v786 = vrsqrt.pop %v778
          %v787 = vrsqrt.pop %v779
          %v788 = vrsqrt.pop %v780
          %v789 = vrsqrt.pop %v781
          %v790 = vmul.f32 %v766, %v782
          %v791 = vmul.f32 %v767, %v783
          %v792 = vmul.f32 %v768, %v784
          %v793 = vmul.f32 %v769, %v785
          %v794 = vmul.f32 %v770, %v786
          %v795 = vmul.f32 %v771, %v787
          %v796 = vmul.f32 %v772, %v788
          %v797 = vmul.f32 %v773, %v789
          %v798 = vld [vmem:[%s4] sm:$0xff]
          %v799 = vld [vmem:[%s4 + $0x8] sm:$0xff]
          %v800 = vld [vmem:[%s4 + $0x10] sm:$0xff]
          %v801 = vld [vmem:[%s4 + $0x18] sm:$0xff]
          %v802 = vld [vmem:[%s4 + $0x20] sm:$0xff]
          %v803 = vld [vmem:[%s4 + $0x28] sm:$0xff]
          %v804 = vld [vmem:[%s4 + $0x30] sm:$0xff]
          %v805 = vld [vmem:[%s4 + $0x38] sm:$0xff]
          %v806 = vmul.f32 %v734, %v790
          %v807 = vmul.f32 %v735, %v791
          %v808 = vmul.f32 %v736, %v792
          %v809 = vmul.f32 %v737, %v793
          %v810 = vmul.f32 %v738, %v794
          %v811 = vmul.f32 %v739, %v795
          %v812 = vmul.f32 %v740, %v796
          %v813 = vmul.f32 %v741, %v797
          %v814 = vsub.f32 %v798, %v806
          %v815 = vsub.f32 %v799, %v807
          %v816 = vsub.f32 %v800, %v808
          %v817 = vsub.f32 %v801, %v809
          %v818 = vsub.f32 %v802, %v810
          %v819 = vsub.f32 %v803, %v811
          %v820 = vsub.f32 %v804, %v812
          %v821 = vsub.f32 %v805, %v813
          %v822 = vld [vmem:[#allocation4] sm:$0xff]
          %v823 = vld [vmem:[#allocation4 + $0x10] sm:$0xff]
          %v824 = vld [vmem:[#allocation4 + $0x20] sm:$0xff]
          %v825 = vld [vmem:[#allocation4 + $0x30] sm:$0xff]
          %v826 = vld [vmem:[#allocation4 + $0x40] sm:$0xff]
          %v827 = vld [vmem:[#allocation4 + $0x50] sm:$0xff]
          %v828 = vld [vmem:[#allocation4 + $0x60] sm:$0xff]
          %v829 = vld [vmem:[#allocation4 + $0x70] sm:$0xff]
          %831 = vset.pattern.permute.xlu0 0
          %832 = vperm.xlu0 %831, %v790
          %v833 = vpop.permute.xlu0 %832
          %836 = vset.pattern.permute.xlu0 0
          %837 = vperm.xlu0 %836, %v791
          %v838 = vpop.permute.xlu0 %837
          %841 = vset.pattern.permute.xlu0 0
          %842 = vperm.xlu0 %841, %v792
          %v843 = vpop.permute.xlu0 %842
          %846 = vset.pattern.permute.xlu0 0
          %847 = vperm.xlu0 %846, %v793
          %v848 = vpop.permute.xlu0 %847
          %851 = vset.pattern.permute.xlu0 0
          %852 = vperm.xlu0 %851, %v794
          %v853 = vpop.permute.xlu0 %852
          %856 = vset.pattern.permute.xlu0 0
          %857 = vperm.xlu0 %856, %v795
          %v858 = vpop.permute.xlu0 %857
          %861 = vset.pattern.permute.xlu0 0
          %862 = vperm.xlu0 %861, %v796
          %v863 = vpop.permute.xlu0 %862
          %866 = vset.pattern.permute.xlu0 0
          %867 = vperm.xlu0 %866, %v797
          %v868 = vpop.permute.xlu0 %867
          %v870 = vmul.f32 %v822, %v833
          %v871 = vmul.f32 %v823, %v838
          %v872 = vmul.f32 %v824, %v843
          %v873 = vmul.f32 %v825, %v848
          %v874 = vmul.f32 %v826, %v853
          %v875 = vmul.f32 %v827, %v858
          %v876 = vmul.f32 %v828, %v863
          %v877 = vmul.f32 %v829, %v868
          %879 = vset.pattern.permute.xlu0 0
          %880 = vperm.xlu0 %879, %v814
          %v881 = vpop.permute.xlu0 %880
          %884 = vset.pattern.permute.xlu0 0
          %885 = vperm.xlu0 %884, %v815
          %v886 = vpop.permute.xlu0 %885
          %889 = vset.pattern.permute.xlu0 0
          %890 = vperm.xlu0 %889, %v816
          %v891 = vpop.permute.xlu0 %890
          %894 = vset.pattern.permute.xlu0 0
          %895 = vperm.xlu0 %894, %v817
          %v896 = vpop.permute.xlu0 %895
          %899 = vset.pattern.permute.xlu0 0
          %900 = vperm.xlu0 %899, %v818
          %v901 = vpop.permute.xlu0 %900
          %904 = vset.pattern.permute.xlu0 0
          %905 = vperm.xlu0 %904, %v819
          %v906 = vpop.permute.xlu0 %905
          %909 = vset.pattern.permute.xlu0 0
          %910 = vperm.xlu0 %909, %v820
          %v911 = vpop.permute.xlu0 %910
          %914 = vset.pattern.permute.xlu0 0
          %915 = vperm.xlu0 %914, %v821
          %v916 = vpop.permute.xlu0 %915
          %v918 = vadd.f32 %v870, %v881
          %v919 = vadd.f32 %v871, %v886
          %v920 = vadd.f32 %v872, %v891
          %v921 = vadd.f32 %v873, %v896
          %v922 = vadd.f32 %v874, %v901
          %v923 = vadd.f32 %v875, %v906
          %v924 = vadd.f32 %v876, %v911
          %v925 = vadd.f32 %v877, %v916
          %v926 = vpack.c.bf16 %v919, %v918
          %v927 = vpack.c.bf16 %v921, %v920
          %v928 = vpack.c.bf16 %v923, %v922
          %v929 = vpack.c.bf16 %v925, %v924
          %v930 = vld [vmem:[%s5] sm:$0xf]
          %v931 = vld [vmem:[%s5 + $0x4] sm:$0xf]
          %v932 = vld [vmem:[%s5 + $0x8] sm:$0xf]
          %v933 = vld [vmem:[%s5 + $0xc] sm:$0xf]
          %v934 = vld [vmem:[%s6] sm:$0xff]
          %v935 = vld [vmem:[%s6 + $0x8] sm:$0xff]
          %v936 = vld [vmem:[%s6 + $0x10] sm:$0xff]
          %v937 = vld [vmem:[%s6 + $0x18] sm:$0xff]
          %939 = vset.pattern.permute.xlu0 0
          %940 = vperm.xlu0 %939, %v934
          %v941 = vpop.permute.xlu0 %940
          %944 = vset.pattern.permute.xlu0 0
          %945 = vperm.xlu0 %944, %v935
          %v946 = vpop.permute.xlu0 %945
          %949 = vset.pattern.permute.xlu0 0
          %950 = vperm.xlu0 %949, %v936
          %v951 = vpop.permute.xlu0 %950
          %954 = vset.pattern.permute.xlu0 0
          %955 = vperm.xlu0 %954, %v937
          %v956 = vpop.permute.xlu0 %955
          %v962 = vunpack.c.l.b16 %v930
          %v963 = vunpack.c.l.b16 %v931
          %v964 = vunpack.c.l.b16 %v932
          %v965 = vunpack.c.l.b16 %v933
          %v966 = vpack.c.b16 %v963, %v962
          %v967 = vpack.c.b16 %v965, %v964
          %vm968 = vcmask 523264
          %v970 = vsel %vm968, %v966, 0
          %v973 = vsel %vm968, %v967, 0
          %975 = vmatprep.subr.bf16.mxu0 0
          %976 = vmatpush1.bf16.msra.mxu0 0
          %977 = vmatprep.subr.bf16.mxu0 0
          %978 = vmatpush1.bf16.msra.mxu0 0
          %979 = vmatprep.subr.bf16.mxu0 0
          %980 = vmatpush1.bf16.msra.mxu0 0
          %981 = vmatprep.subr.bf16.mxu0 0
          %982 = vmatpush1.bf16.msra.mxu0 0
          %983 = vmatprep.subr.bf16.mxu0 0
          %984 = vmatpush1.bf16.msra.mxu0 %v929
          %985 = vmatprep.subr.bf16.mxu0 0
          %986 = vmatpush1.bf16.msra.mxu0 %v928
          %987 = vmatprep.subr.bf16.mxu0 0
          %988 = vmatpush1.bf16.msra.mxu0 %v927
          %989 = vmatprep.subr.bf16.mxu0 0
          %990 = vmatpush1.bf16.msra.mxu0 %v926
          %991 = vmatprep.subr.bf16.mxu0 0
          %992 = vmatpush2.bf16.msra.mxu0 0
          %993 = vmatprep.subr.bf16.mxu0 0
          %994 = vmatpush2.bf16.msra.mxu0 0
          %995 = vmatprep.subr.bf16.mxu0 0
          %996 = vmatpush2.bf16.msra.mxu0 0
          %997 = vmatprep.subr.bf16.mxu0 0
          %998 = vmatpush2.bf16.msra.mxu0 0
          %999 = vmatprep.subr.bf16.mxu0 0
          %1000 = vmatpush2.bf16.msra.mxu0 0
          %1001 = vmatprep.subr.bf16.mxu0 0
          %1002 = vmatpush2.bf16.msra.mxu0 0
          %1003 = vmatprep.subr.bf16.mxu0 0
          %1004 = vmatpush2.bf16.msra.mxu0 0
          %1005 = vmatprep.subr.bf16.mxu0 0
          %1006 = vmatpush2.bf16.msra.mxu0 0
          %1007 = vmatprep.mubr.bf16.mxu0 0
          %1008 = vmatmul.mubr.bf16.gmra.mxu0 %v970
          %v1009 = vpop.f32.mrf.mxu0
          %v1010 = vadd.f32 %v941, %v1009
          %v1011 = vpop.f32.mrf.mxu0
          %v1012 = vpop.f32.mrf.mxu0
          %v1013 = vadd.f32 %v946, %v1012
          %v1014 = vpop.f32.mrf.mxu0
          %1015 = vmatprep.mubr.bf16.mxu0 0
          %1016 = vmatmul.mubr.bf16.gmra.mxu0 %v973
          %v1017 = vpop.f32.mrf.mxu0
          %v1018 = vadd.f32 %v951, %v1017
          %v1019 = vpop.f32.mrf.mxu0
          %v1020 = vpop.f32.mrf.mxu0
          %v1021 = vadd.f32 %v956, %v1020
          %v1022 = vpop.f32.mrf.mxu0
          %1023 = vdwg.mxu0
          %v1024 = vmax.f32 %v1010, 0.0
          %v1025 = vmax.f32 %v1013, 0.0
          %v1026 = vmax.f32 %v1018, 0.0
          %v1027 = vmax.f32 %v1021, 0.0
          %1028 = vst [vmem:[#allocation5] sm:$0xff] %v1024
          %1029 = vst [vmem:[#allocation5 + $0x10] sm:$0xff] %v1025
          %1030 = vst [vmem:[#allocation5 + $0x20] sm:$0xff] %v1026
          %1031 = vst [vmem:[#allocation5 + $0x30] sm:$0xff] %v1027
          %1032 = vadd.xlane.f32.xlu0 %v1024
          %v1033 = vpop.xlane.xlu0 %1032
          %1034 = vadd.xlane.f32.xlu0 %v1025
          %v1035 = vpop.xlane.xlu0 %1034
          %1036 = vadd.xlane.f32.xlu0 %v1026
          %v1037 = vpop.xlane.xlu0 %1036
          %1038 = vadd.xlane.f32.xlu0 %v1027
          %v1039 = vpop.xlane.xlu0 %1038
          %v1040 = vadd.f32 %v1033, 0.0
          %v1041 = vadd.f32 %v1035, 0.0
          %v1042 = vadd.f32 %v1037, 0.0
          %v1043 = vadd.f32 %v1039, 0.0
          %v1044 = vmul.f32 %v1024, %v1024
          %v1045 = vmul.f32 %v1025, %v1025
          %v1046 = vmul.f32 %v1026, %v1026
          %v1047 = vmul.f32 %v1027, %v1027
          %1048 = vadd.xlane.f32.xlu0 %v1044
          %v1049 = vpop.xlane.xlu0 %1048
          %1050 = vadd.xlane.f32.xlu0 %v1045
          %v1051 = vpop.xlane.xlu0 %1050
          %1052 = vadd.xlane.f32.xlu0 %v1046
          %v1053 = vpop.xlane.xlu0 %1052
          %1054 = vadd.xlane.f32.xlu0 %v1047
          %v1055 = vpop.xlane.xlu0 %1054
          %v1056 = vadd.f32 %v1049, 0.0
          %v1057 = vadd.f32 %v1051, 0.0
          %v1058 = vadd.f32 %v1053, 0.0
          %v1059 = vadd.f32 %v1055, 0.0
          %s1060 = scalar_lea.vmem [#allocation4], 8
          %v1061 = vld [vmem:[%s1060] sm:$0xff]
          %v1062 = vld [vmem:[%s1060 + $0x10] sm:$0xff]
          %v1063 = vld [vmem:[%s1060 + $0x20] sm:$0xff]
          %v1064 = vld [vmem:[%s1060 + $0x30] sm:$0xff]
          %v1065 = vld [vmem:[%s1060 + $0x40] sm:$0xff]
          %v1066 = vld [vmem:[%s1060 + $0x50] sm:$0xff]
          %v1067 = vld [vmem:[%s1060 + $0x60] sm:$0xff]
          %v1068 = vld [vmem:[%s1060 + $0x70] sm:$0xff]
          %v1069 = vmul.f32 %v1061, %v833
          %v1070 = vmul.f32 %v1062, %v838
          %v1071 = vmul.f32 %v1063, %v843
          %v1072 = vmul.f32 %v1064, %v848
          %v1073 = vmul.f32 %v1065, %v853
          %v1074 = vmul.f32 %v1066, %v858
          %v1075 = vmul.f32 %v1067, %v863
          %v1076 = vmul.f32 %v1068, %v868
          %v1077 = vadd.f32 %v1069, %v881
          %v1078 = vadd.f32 %v1070, %v886
          %v1079 = vadd.f32 %v1071, %v891
          %v1080 = vadd.f32 %v1072, %v896
          %v1081 = vadd.f32 %v1073, %v901
          %v1082 = vadd.f32 %v1074, %v906
          %v1083 = vadd.f32 %v1075, %v911
          %v1084 = vadd.f32 %v1076, %v916
          %v1085 = vpack.c.bf16 %v1078, %v1077
          %v1086 = vpack.c.bf16 %v1080, %v1079
          %v1087 = vpack.c.bf16 %v1082, %v1081
          %v1088 = vpack.c.bf16 %v1084, %v1083
          %v1089 = vld [vmem:[%s5] sm:$0xf]
          %v1090 = vld [vmem:[%s5 + $0x4] sm:$0xf]
          %v1091 = vld [vmem:[%s5 + $0x8] sm:$0xf]
          %v1092 = vld [vmem:[%s5 + $0xc] sm:$0xf]
          %v1093 = vld [vmem:[%s6] sm:$0xff]
          %v1094 = vld [vmem:[%s6 + $0x8] sm:$0xff]
          %v1095 = vld [vmem:[%s6 + $0x10] sm:$0xff]
          %v1096 = vld [vmem:[%s6 + $0x18] sm:$0xff]
          %1098 = vset.pattern.permute.xlu0 0
          %1099 = vperm.xlu0 %1098, %v1093
          %v1100 = vpop.permute.xlu0 %1099
          %1103 = vset.pattern.permute.xlu0 0
          %1104 = vperm.xlu0 %1103, %v1094
          %v1105 = vpop.permute.xlu0 %1104
          %1108 = vset.pattern.permute.xlu0 0
          %1109 = vperm.xlu0 %1108, %v1095
          %v1110 = vpop.permute.xlu0 %1109
          %1113 = vset.pattern.permute.xlu0 0
          %1114 = vperm.xlu0 %1113, %v1096
          %v1115 = vpop.permute.xlu0 %1114
          %v1121 = vunpack.c.l.b16 %v1089
          %v1122 = vunpack.c.l.b16 %v1090
          %v1123 = vunpack.c.l.b16 %v1091
          %v1124 = vunpack.c.l.b16 %v1092
          %v1125 = vpack.c.b16 %v1122, %v1121
          %v1126 = vpack.c.b16 %v1124, %v1123
          %v1128 = vsel %vm968, %v1125, 0
          %v1131 = vsel %vm968, %v1126, 0
          %1133 = vmatprep.subr.bf16.mxu0 0
          %1134 = vmatpush1.bf16.msra.mxu0 0
          %1135 = vmatprep.subr.bf16.mxu0 0
          %1136 = vmatpush1.bf16.msra.mxu0 0
          %1137 = vmatprep.subr.bf16.mxu0 0
          %1138 = vmatpush1.bf16.msra.mxu0 0
          %1139 = vmatprep.subr.bf16.mxu0 0
          %1140 = vmatpush1.bf16.msra.mxu0 0
          %1141 = vmatprep.subr.bf16.mxu0 0
          %1142 = vmatpush1.bf16.msra.mxu0 %v1088
          %1143 = vmatprep.subr.bf16.mxu0 0
          %1144 = vmatpush1.bf16.msra.mxu0 %v1087
          %1145 = vmatprep.subr.bf16.mxu0 0
          %1146 = vmatpush1.bf16.msra.mxu0 %v1086
          %1147 = vmatprep.subr.bf16.mxu0 0
          %1148 = vmatpush1.bf16.msra.mxu0 %v1085
          %1149 = vmatprep.subr.bf16.mxu0 0
          %1150 = vmatpush2.bf16.msra.mxu0 0
          %1151 = vmatprep.subr.bf16.mxu0 0
          %1152 = vmatpush2.bf16.msra.mxu0 0
          %1153 = vmatprep.subr.bf16.mxu0 0
          %1154 = vmatpush2.bf16.msra.mxu0 0
          %1155 = vmatprep.subr.bf16.mxu0 0
          %1156 = vmatpush2.bf16.msra.mxu0 0
          %1157 = vmatprep.subr.bf16.mxu0 0
          %1158 = vmatpush2.bf16.msra.mxu0 0
          %1159 = vmatprep.subr.bf16.mxu0 0
          %1160 = vmatpush2.bf16.msra.mxu0 0
          %1161 = vmatprep.subr.bf16.mxu0 0
          %1162 = vmatpush2.bf16.msra.mxu0 0
          %1163 = vmatprep.subr.bf16.mxu0 0
          %1164 = vmatpush2.bf16.msra.mxu0 0
          %1165 = vmatprep.mubr.bf16.mxu0 0
          %1166 = vmatmul.mubr.bf16.gmra.mxu0 %v1128
          %v1167 = vpop.f32.mrf.mxu0
          %v1168 = vadd.f32 %v1100, %v1167
          %v1169 = vpop.f32.mrf.mxu0
          %v1170 = vpop.f32.mrf.mxu0
          %v1171 = vadd.f32 %v1105, %v1170
          %v1172 = vpop.f32.mrf.mxu0
          %1173 = vmatprep.mubr.bf16.mxu0 0
          %1174 = vmatmul.mubr.bf16.gmra.mxu0 %v1131
          %v1175 = vpop.f32.mrf.mxu0
          %v1176 = vadd.f32 %v1110, %v1175
          %v1177 = vpop.f32.mrf.mxu0
          %v1178 = vpop.f32.mrf.mxu0
          %v1179 = vadd.f32 %v1115, %v1178
          %v1180 = vpop.f32.mrf.mxu0
          %1181 = vdwg.mxu0
          %v1182 = vmax.f32 %v1168, 0.0
          %v1183 = vmax.f32 %v1171, 0.0
          %v1184 = vmax.f32 %v1176, 0.0
          %v1185 = vmax.f32 %v1179, 0.0
          %s1186 = scalar_lea.vmem [#allocation5], 8
          %1187 = vst [vmem:[%s1186] sm:$0xff] %v1182
          %1188 = vst [vmem:[%s1186 + $0x10] sm:$0xff] %v1183
          %1189 = vst [vmem:[%s1186 + $0x20] sm:$0xff] %v1184
          %1190 = vst [vmem:[%s1186 + $0x30] sm:$0xff] %v1185
          %1191 = vadd.xlane.f32.xlu0 %v1182
          %v1192 = vpop.xlane.xlu0 %1191
          %1193 = vadd.xlane.f32.xlu0 %v1183
          %v1194 = vpop.xlane.xlu0 %1193
          %1195 = vadd.xlane.f32.xlu0 %v1184
          %v1196 = vpop.xlane.xlu0 %1195
          %1197 = vadd.xlane.f32.xlu0 %v1185
          %v1198 = vpop.xlane.xlu0 %1197
          %v1199 = vadd.f32 %v1040, %v1192
          %v1200 = vadd.f32 %v1041, %v1194
          %v1201 = vadd.f32 %v1042, %v1196
          %v1202 = vadd.f32 %v1043, %v1198
          %v1203 = vmul.f32 %v1182, %v1182
          %v1204 = vmul.f32 %v1183, %v1183
          %v1205 = vmul.f32 %v1184, %v1184
          %v1206 = vmul.f32 %v1185, %v1185
          %1207 = vadd.xlane.f32.xlu0 %v1203
          %v1208 = vpop.xlane.xlu0 %1207
          %1209 = vadd.xlane.f32.xlu0 %v1204
          %v1210 = vpop.xlane.xlu0 %1209
          %1211 = vadd.xlane.f32.xlu0 %v1205
          %v1212 = vpop.xlane.xlu0 %1211
          %1213 = vadd.xlane.f32.xlu0 %v1206
          %v1214 = vpop.xlane.xlu0 %1213
          %v1215 = vadd.f32 %v1056, %v1208
          %v1216 = vadd.f32 %v1057, %v1210
          %v1217 = vadd.f32 %v1058, %v1212
          %v1218 = vadd.f32 %v1059, %v1214
          %v1219 = vmul.f32 %v1199, 0.00390625
          %v1220 = vmul.f32 %v1200, 0.00390625
          %v1221 = vmul.f32 %v1201, 0.00390625
          %v1222 = vmul.f32 %v1202, 0.00390625
          %v1223 = vmul.f32 %v1215, 0.00390625
          %v1224 = vmul.f32 %v1216, 0.00390625
          %v1225 = vmul.f32 %v1217, 0.00390625
          %v1226 = vmul.f32 %v1218, 0.00390625
          %v1227 = vmul.f32 %v1219, %v1219
          %v1228 = vmul.f32 %v1220, %v1220
          %v1229 = vmul.f32 %v1221, %v1221
          %v1230 = vmul.f32 %v1222, %v1222
          %v1231 = vsub.f32 %v1223, %v1227
          %v1232 = vsub.f32 %v1224, %v1228
          %v1233 = vsub.f32 %v1225, %v1229
          %v1234 = vsub.f32 %v1226, %v1230
          %v1235 = vld [vmem:[%s7] sm:$0xff]
          %v1236 = vld [vmem:[%s7 + $0x8] sm:$0xff]
          %v1237 = vld [vmem:[%s7 + $0x10] sm:$0xff]
          %v1238 = vld [vmem:[%s7 + $0x18] sm:$0xff]
          %v1239 = vadd.f32 %v1231, 1e-05
          %v1240 = vadd.f32 %v1232, 1e-05
          %v1241 = vadd.f32 %v1233, 1e-05
          %v1242 = vadd.f32 %v1234, 1e-05
          %v1243 = vrsqrt.pop %v1239
          %v1244 = vrsqrt.pop %v1240
          %v1245 = vrsqrt.pop %v1241
          %v1246 = vrsqrt.pop %v1242
          %v1247 = vmul.f32 %v1235, %v1243
          %v1248 = vmul.f32 %v1236, %v1244
          %v1249 = vmul.f32 %v1237, %v1245
          %v1250 = vmul.f32 %v1238, %v1246
          %v1251 = vld [vmem:[%s8] sm:$0xff]
          %v1252 = vld [vmem:[%s8 + $0x8] sm:$0xff]
          %v1253 = vld [vmem:[%s8 + $0x10] sm:$0xff]
          %v1254 = vld [vmem:[%s8 + $0x18] sm:$0xff]
          %v1255 = vmul.f32 %v1219, %v1247
          %v1256 = vmul.f32 %v1220, %v1248
          %v1257 = vmul.f32 %v1221, %v1249
          %v1258 = vmul.f32 %v1222, %v1250
          %v1259 = vsub.f32 %v1251, %v1255
          %v1260 = vsub.f32 %v1252, %v1256
          %v1261 = vsub.f32 %v1253, %v1257
          %v1262 = vsub.f32 %v1254, %v1258
          %v1263 = vld [vmem:[%s9] sm:$0xff]
          %v1264 = vld [vmem:[%s9 + $0x8] sm:$0xff]
          %v1265 = vld [vmem:[%s9 + $0x10] sm:$0xff]
          %v1266 = vld [vmem:[%s9 + $0x18] sm:$0xff]
          %v1267 = vmul.f32 %v1263, %v1247
          %v1268 = vmul.f32 %v1264, %v1248
          %v1269 = vmul.f32 %v1265, %v1249
          %v1270 = vmul.f32 %v1266, %v1250
          %v1271 = vmul.f32 %v1263, %v1259
          %v1272 = vmul.f32 %v1264, %v1260
          %v1273 = vmul.f32 %v1265, %v1261
          %v1274 = vmul.f32 %v1266, %v1262
          %v1275 = vsel %vm657, %v1271, 0.0
          %v1276 = vsel %vm657, %v1272, 0.0
          %v1277 = vadd.f32 %v1275, %v1276
          %v1278 = vsel %vm657, %v1273, 0.0
          %v1279 = vadd.f32 %v1277, %v1278
          %v1280 = vsel %vm657, %v1274, 0.0
          %v1281 = vadd.f32 %v1279, %v1280
          %v1282 = vrot.slane %v1281, 4
          %v1283 = vadd.f32 %v1281, %v1282
          %v1284 = vrot.slane %v1283, 2
          %v1285 = vadd.f32 %v1283, %v1284
          %v1286 = vrot.slane %v1285, 1
          %v1287 = vadd.f32 %v1285, %v1286
          %v1288 = vld [vmem:[#allocation6] sm:$0x1]
          %v1289 = vadd.f32 %v1287, %v1288
          %v1290 = vld [vmem:[#allocation5] sm:$0xff]
          %v1291 = vld [vmem:[#allocation5 + $0x10] sm:$0xff]
          %v1292 = vld [vmem:[#allocation5 + $0x20] sm:$0xff]
          %v1293 = vld [vmem:[#allocation5 + $0x30] sm:$0xff]
          %1295 = vset.pattern.permute.xlu0 0
          %1296 = vperm.xlu0 %1295, %v1267
          %v1297 = vpop.permute.xlu0 %1296
          %1300 = vset.pattern.permute.xlu0 0
          %1301 = vperm.xlu0 %1300, %v1268
          %v1302 = vpop.permute.xlu0 %1301
          %1305 = vset.pattern.permute.xlu0 0
          %1306 = vperm.xlu0 %1305, %v1269
          %v1307 = vpop.permute.xlu0 %1306
          %1310 = vset.pattern.permute.xlu0 0
          %1311 = vperm.xlu0 %1310, %v1270
          %v1312 = vpop.permute.xlu0 %1311
          %v1314 = vmul.f32 %v1290, %v1297
          %v1315 = vmul.f32 %v1291, %v1302
          %v1316 = vmul.f32 %v1292, %v1307
          %v1317 = vmul.f32 %v1293, %v1312
          %v1318 = vadd.f32 %v1314, %v1315
          %v1319 = vadd.f32 %v1318, %v1316
          %v1320 = vadd.f32 %v1319, %v1317
          %v1321 = vrot.slane %v1320, 4
          %v1322 = vadd.f32 %v1320, %v1321
          %v1323 = vrot.slane %v1322, 2
          %v1324 = vadd.f32 %v1322, %v1323
          %v1325 = vrot.slane %v1324, 1
          %v1326 = vadd.f32 %v1324, %v1325
          %1328 = vset.pattern.permute.xlu0 0
          %1329 = vperm.xlu0 %1328, %v1289
          %v1330 = vpop.permute.xlu0 %1329
          %v1332 = vadd.f32 %v1326, %v1330
          %v1333 = vlaneseq
          %vm1334 = vcmp.ge.s32.totalorder %v1333, 0
          %vm1335 = vcmp.lt.s32.totalorder %v1333, 128
          %vm1336 = vmand %vm1334, %vm1335
          %1337 = vst.msk [vmem:[#allocation8] sm:$0x1] %vm1336, %v1332
          %v1338 = vld [vmem:[%s1186] sm:$0xff]
          %v1339 = vld [vmem:[%s1186 + $0x10] sm:$0xff]
          %v1340 = vld [vmem:[%s1186 + $0x20] sm:$0xff]
          %v1341 = vld [vmem:[%s1186 + $0x30] sm:$0xff]
          %v1342 = vmul.f32 %v1338, %v1297
          %v1343 = vmul.f32 %v1339, %v1302
          %v1344 = vmul.f32 %v1340, %v1307
          %v1345 = vmul.f32 %v1341, %v1312
          %v1346 = vadd.f32 %v1342, %v1343
          %v1347 = vadd.f32 %v1346, %v1344
          %v1348 = vadd.f32 %v1347, %v1345
          %v1349 = vrot.slane %v1348, 4
          %v1350 = vadd.f32 %v1348, %v1349
          %v1351 = vrot.slane %v1350, 2
          %v1352 = vadd.f32 %v1350, %v1351
          %v1353 = vrot.slane %v1352, 1
          %v1354 = vadd.f32 %v1352, %v1353
          %v1355 = vadd.f32 %v1354, %v1330
          %s1356 = scalar_lea.vmem [#allocation8], 1
          %1357 = vst.msk [vmem:[%s1356] sm:$0x1] %vm1336, %v1355
        $region110: #{tpu_custom_call.1} parent=97 // pred_fallthru
          _
        // Predicated region
        $region111: #{tpu_custom_call.1} parent=97 // pred_check
          %p1358 = pneg %p274
        $region112: #{tpu_custom_call.1} parent=97 // pred_check_branch
          %1360 = sbr.rel (%p1358) target = $region114
        $region113: #{tpu_custom_call.1} parent=97 // pred_region
          %s1362 = ssub.s32 32, 32
          %1363 = vsyncadd [#allocation9], %s1362
          %s1365 = sshll.u32 [#allocation8], 4
          %s1366 = int_to_ptr.vmem [resolvable:$true] %s1365
          %1368 = dma.vmem_to_hbm [thread:$0]  %s1366, 32, %s11, [#allocation9]
        $region114: #{tpu_custom_call.1} parent=97 // pred_fallthru
          _
        // Predicated region
        $region115: #{tpu_custom_call.1} parent=97 // pred_check
          %p1369 = pneg %p274
        $region116: #{tpu_custom_call.1} parent=97 // pred_check_branch
          %1371 = sbr.rel (%p1369) target = $region118
        $region117: #{tpu_custom_call.1} parent=97 // pred_region
          %1372 = dma.done [#allocation9], 32
        $region118: #{tpu_custom_call.1} parent=97 // pred_fallthru
          _
      $region98: #{tpu_custom_call.1} parent=5 // pred_fallthru
        _
      %p1373 = scmp.le.s32.totalorder 2, %s20
      // Predicated region
      $region119: #{tpu_custom_call.1} parent=5 // pred_check
        %p1374 = pneg %p1373
      $region120: #{tpu_custom_call.1} parent=5 // pred_check_branch
        %1376 = sbr.rel (%p1374) target = $region122
      $region121: #{tpu_custom_call.1} parent=5 // pred_region
        %s1377 = ssub.s32 %s20, 2
      $region122: #{tpu_custom_call.1} parent=5 // pred_fallthru
        _
    $region6: #{tpu_custom_call.1} parent=1 // loop_footer
      %s24 = sadd.s32 1, %s20
    $region7: #{tpu_custom_call.1} parent=1 // loop_footer_branch
      %19 = sbr.rel target = $region3
    $region8: #{tpu_custom_call.1} parent=1 // loop_exit
      _
    %1378 = vsyncpa [#allocation9], 1
    %s1379 = scalar_lea.sflag [#allocation9], 1
    %1380 = vsyncpa %s1379, 1

</llo_original>
